<compile_context>
chip_gen: v6e
topology: v6e:2x2x1
jax: 0.10.0
libtpu: 0.0.40
codegen_flags: <defaults>
</compile_context>

<pallas_src>
import jax
import jax.numpy as jnp
from jax.experimental import pallas as pl
from jax.experimental.pallas import tpu as pltpu

_OUT_PAD = 128  # lane-dense output width for the MXU layer-3 head


def _make_disc_kernel(mxu_head: bool, bf16_act: bool):
    act_dt = jnp.bfloat16 if bf16_act else jnp.float32

    def kernel(x_ref, z_ref, w1x_ref, w1z_ref, b1_ref,
               w2_ref, b2_ref, w3_ref, b3_ref, out_ref):
        x_bf = x_ref[...].astype(jnp.bfloat16)
        z_bf = z_ref[...].astype(jnp.bfloat16)

        # Layer 1: concat-matmul split into two MXU dots (no materialized
        # concat); both accumulate in f32.
        h = jnp.dot(x_bf, w1x_ref[...], preferred_element_type=jnp.float32)
        h = h + jnp.dot(z_bf, w1z_ref[...], preferred_element_type=jnp.float32)
        h = (h + b1_ref[...]).astype(act_dt)
        h = jnp.maximum(h, 0.2 * h)            # LeakyReLU(0.2): mul + max only

        # Layer 2: (tm, 512) @ (512, 512) + bias.
        h = jnp.dot(h.astype(jnp.bfloat16), w2_ref[...],
                    preferred_element_type=jnp.float32)
        h = (h + b2_ref[...]).astype(act_dt)
        h = jnp.maximum(h, 0.2 * h)

        # Layer 3.
        if mxu_head:
            # (tm, 512) @ (512, 128) zero-padded head on the MXU; only column 0
            # is meaningful (wrapper slices it).  Lane-dense -> unmasked stores.
            o = jnp.dot(h.astype(jnp.bfloat16), w3_ref[...],
                        preferred_element_type=jnp.float32)
        else:
            # v5e path (MXU-bound): VPU multiply + XLU lane reduce is free
            # filler under MXU slack.
            w3 = w3_ref[...].astype(jnp.float32)                  # (1, 512)
            o = jnp.sum(h.astype(jnp.float32) * w3, axis=-1, keepdims=True)

        out_ref[...] = (o + b3_ref[...]).astype(out_ref.dtype)

    return kernel


def _default_head_is_mxu():
    # v6e / v7x: VPU/XLU-bound -> padded-N MXU head wins.
    # v5e: MXU-bound -> keep layer 3 on the VPU/XLU (no bf16 VALU either).
    try:
        kind = jax.devices()[0].device_kind.lower()
    except Exception:
        return True
    return not ("v5e" in kind or "v5 lite" in kind or "v5lite" in kind)


def discriminator_forward(x, z, params, *, block_m=512, mxu_head=None, bf16_act=None):
    """x: (B, C, H, W) float32, z: (B, latent_dim) float32 -> (B, 1) float32."""
    B = x.shape[0]
    x_flat = x.reshape(B, -1)
    w1x, w1z, b1, w2, b2, w3_row, b3 = params
    chw = x_flat.shape[1]
    latent = z.shape[1]
    hidden = w2.shape[0]
    assert w1x.shape[0] == chw and w1z.shape[0] == latent

    if mxu_head is None:
        mxu_head = _default_head_is_mxu()
    if bf16_act is None:
        bf16_act = mxu_head          # bf16 VPU only pays off on v6e/v7x

    # Batch tiling: whole batch in one tile when small; split into two tiles
    # (both TensorCores on v7x) for mid-size batches; otherwise pipeline over
    # block_m-row tiles, padding only if needed.
    tm = min(block_m, B)
    if B <= block_m and 128 <= B and B % 16 == 0:
        tm = B // 2                  # nb = 2 -> "parallel" axis shards over 2 TCs
    nb = pl.cdiv(B, tm)
    B_pad = nb * tm
    if B_pad != B:
        # TODO(synk): handle the ragged last tile with masked writes to avoid
        # this extra un-pipelined HBM pass over the activations.
        x_flat = jnp.pad(x_flat, ((0, B_pad - B), (0, 0)))
        z = jnp.pad(z, ((0, B_pad - B), (0, 0)))

    out_cols = _OUT_PAD if mxu_head else 1
    if mxu_head:
        # Zero-padded (hidden, 128) head; 128 KiB — precompute in production.
        w3_in = jnp.pad(w3_row.T, ((0, 0), (0, _OUT_PAD - 1)))
        w3_spec = pl.BlockSpec((hidden, _OUT_PAD), lambda i: (0, 0))
    else:
        w3_in = w3_row
        w3_spec = pl.BlockSpec((1, hidden), lambda i: (0, 0))

    flops = 2 * B_pad * (chw * hidden + latent * hidden
                         + hidden * hidden + hidden * out_cols)
    bytes_accessed = (
        x_flat.size * 4 + z.size * 4                               # f32 activations
        + (w1x.size + w1z.size + w2.size + w3_in.size) * 2         # bf16 weights
        + (b1.size + b2.size + b3.size) * 4                        # f32 biases
        + B_pad * out_cols * 4                                     # output
    )

    # TODO(synk): mark the resident weight/bias specs with
    # pipeline_mode=pl.Buffered(1) once verified on the target jax version
    # (saves ~0.8 MiB VMEM and one redundant step-0 DMA).
    out = pl.pallas_call(
        _make_disc_kernel(mxu_head, bf16_act),
        out_shape=jax.ShapeDtypeStruct((B_pad, out_cols), jnp.float32),
        grid=(nb,),
        in_specs=[
            pl.BlockSpec((tm, chw), lambda i: (i, 0)),         # x_flat tile
            pl.BlockSpec((tm, latent), lambda i: (i, 0)),      # z tile
            pl.BlockSpec((chw, hidden), lambda i: (0, 0)),     # W1 (x part), resident
            pl.BlockSpec((latent, hidden), lambda i: (0, 0)),  # W1 (z part), resident
            pl.BlockSpec((1, hidden), lambda i: (0, 0)),       # b1
            pl.BlockSpec((hidden, hidden), lambda i: (0, 0)),  # W2, resident
            pl.BlockSpec((1, hidden), lambda i: (0, 0)),       # b2
            w3_spec,                                           # W3 (row or padded)
            pl.BlockSpec((1, 1), lambda i: (0, 0)),            # b3
        ],
        out_specs=pl.BlockSpec((tm, out_cols), lambda i: (i, 0)),
        compiler_params=pltpu.CompilerParams(
            dimension_semantics=("parallel",),
            vmem_limit_bytes=32 * 1024 * 1024),
        cost_estimate=pl.CostEstimate(
            flops=flops, transcendentals=0, bytes_accessed=bytes_accessed),
    )(x_flat, z, w1x, w1z, b1, w2, b2, w3_in, b3)

    return out[:B, :1]


def init_params(key, chw, latent_dim, hidden=512):
    """Deterministic synthetic params.

    Weights are stored as (in_features, out_features) (transposed vs. PyTorch),
    with W1 pre-split into its x part (chw rows) and z part (latent rows),
    W3 stored as a (1, hidden) row, and all weights cast to bf16.
    """
    in_features = chw + latent_dim
    k1, k2, k3, k4, k5, k6 = jax.random.split(key, 6)
    s1 = 1.0 / jnp.sqrt(in_features)
    s2 = 1.0 / jnp.sqrt(hidden)
    w1 = jax.random.uniform(k1, (in_features, hidden), jnp.float32, -s1, s1)
    b1 = jax.random.uniform(k2, (1, hidden), jnp.float32, -s1, s1)
    w2 = jax.random.uniform(k3, (hidden, hidden), jnp.float32, -s2, s2)
    b2 = jax.random.uniform(k4, (1, hidden), jnp.float32, -s2, s2)
    w3 = jax.random.uniform(k5, (hidden, 1), jnp.float32, -s2, s2)
    b3 = jax.random.uniform(k6, (1, 1), jnp.float32, -s2, s2)

    w1x = w1[:chw].astype(jnp.bfloat16)        # (chw, hidden)
    w1z = w1[chw:].astype(jnp.bfloat16)        # (latent, hidden)
    w2_bf = w2.astype(jnp.bfloat16)            # (hidden, hidden)
    w3_row = w3.T.astype(jnp.bfloat16)         # (1, hidden)
    return (w1x, w1z, b1, w2_bf, b2, w3_row, b3)


def reference_forward(x, z, params):
    """Pure-JAX reference (same bf16 weights upcast to f32, f32 activations)."""
    w1x, w1z, b1, w2, b2, w3_row, b3 = params
    w1 = jnp.concatenate([w1x, w1z], axis=0).astype(jnp.float32)
    c = jnp.concatenate([x.reshape(x.shape[0], -1), z], axis=1)
    h = c @ w1 + b1
    h = jnp.where(h > 0, h, 0.2 * h)
    h = h @ w2.astype(jnp.float32) + b2
    h = jnp.where(h > 0, h, 0.2 * h)
    return h @ w3_row.astype(jnp.float32).T + b3


if __name__ == "__main__":
    key = jax.random.PRNGKey(0)
    kx, kz, kp = jax.random.split(key, 3)

    # Small shapes consistent with the module: x = (B, C, H, W), z = (B, latent_dim)
    B, C, H, W = 2, 1, 16, 16
    latent_dim = 32

    x = jax.random.normal(kx, (B, C, H, W), jnp.float32)
    z = jax.random.normal(kz, (B, latent_dim), jnp.float32)
    params = init_params(kp, C * H * W, latent_dim)

    ref = reference_forward(x, z, params)

    # Default (device-kind-selected) head.
    out = discriminator_forward(x, z, params)
    out = jax.block_until_ready(out)
    assert out.shape == (B, 1), out.shape
    # bf16 weights / bf16 in-kernel activation casts -> looser tolerance.
    assert jnp.allclose(out, ref, atol=5e-2, rtol=5e-2), (out, ref)

    # Exercise the other layer-3 head too, so both code paths are known-good.
    out_alt = discriminator_forward(x, z, params,
                                    mxu_head=not _default_head_is_mxu())
    out_alt = jax.block_until_ready(out_alt)
    assert out_alt.shape == (B, 1), out_alt.shape
    assert jnp.allclose(out_alt, ref, atol=5e-2, rtol=5e-2), (out_alt, ref)

    print("KERNEL_OK")
</pallas_src>

<mosaic_0001>
module attributes {stable_mosaic.version = 11 : i64} {
  func.func @kernel(%arg0: i32, %arg1: memref<2x256xf32, #tpu.memory_space<vmem>>, %arg2: memref<2x32xf32, #tpu.memory_space<vmem>>, %arg3: memref<256x512xbf16, #tpu.memory_space<vmem>>, %arg4: memref<32x512xbf16, #tpu.memory_space<vmem>>, %arg5: memref<1x512xf32, #tpu.memory_space<vmem>>, %arg6: memref<512x512xbf16, #tpu.memory_space<vmem>>, %arg7: memref<1x512xf32, #tpu.memory_space<vmem>>, %arg8: memref<512x128xbf16, #tpu.memory_space<vmem>>, %arg9: memref<1x1xf32, #tpu.memory_space<vmem>>, %arg10: memref<2x128xf32, #tpu.memory_space<vmem>>) attributes {dimension_semantics = [#tpu.dimension_semantics<parallel>], iteration_bounds = array<i64: 1>, scalar_prefetch = 0 : i64, scratch_operands = 0 : i64, tpu.core_type = #tpu.core_type<tc>, window_params = [{transform_indices = @transform_0, window_bounds = array<i64: 2, 256>}, {transform_indices = @transform_1, window_bounds = array<i64: 2, 32>}, {pipeline_mode = #tpu.pipeline_mode<synchronous>, transform_indices = @transform_2, window_bounds = array<i64: 256, 512>}, {pipeline_mode = #tpu.pipeline_mode<synchronous>, transform_indices = @transform_3, window_bounds = array<i64: 32, 512>}, {pipeline_mode = #tpu.pipeline_mode<synchronous>, transform_indices = @transform_4, window_bounds = array<i64: 1, 512>}, {pipeline_mode = #tpu.pipeline_mode<synchronous>, transform_indices = @transform_5, window_bounds = array<i64: 512, 512>}, {pipeline_mode = #tpu.pipeline_mode<synchronous>, transform_indices = @transform_6, window_bounds = array<i64: 1, 512>}, {pipeline_mode = #tpu.pipeline_mode<synchronous>, transform_indices = @transform_7, window_bounds = array<i64: 512, 128>}, {pipeline_mode = #tpu.pipeline_mode<synchronous>, transform_indices = @transform_8, window_bounds = array<i64: 1, 1>}, {transform_indices = @transform_9, window_bounds = array<i64: 2, 128>}]} {
    %c0 = arith.constant 0 : index
    %c0_0 = arith.constant 0 : index
    %0 = vector.load %arg1[%c0, %c0_0] : memref<2x256xf32, #tpu.memory_space<vmem>>, vector<2x256xf32>
    %1 = arith.truncf %0 : vector<2x256xf32> to vector<2x256xbf16>
    %c0_1 = arith.constant 0 : index
    %c0_2 = arith.constant 0 : index
    %2 = vector.load %arg2[%c0_1, %c0_2] : memref<2x32xf32, #tpu.memory_space<vmem>>, vector<2x32xf32>
    %3 = arith.truncf %2 : vector<2x32xf32> to vector<2x32xbf16>
    %c0_3 = arith.constant 0 : index
    %c0_4 = arith.constant 0 : index
    %4 = vector.load %arg3[%c0_3, %c0_4] : memref<256x512xbf16, #tpu.memory_space<vmem>>, vector<256x512xbf16>
    %cst = arith.constant dense<0.000000e+00> : vector<2x512xf32>
    %5 = tpu.matmul %1, %4, %cst {dimension_numbers = #tpu.dot_dimension_numbers<[1], [0], [0], [1], [0, 0, 1, 1], [], []>} : vector<2x256xbf16>, vector<256x512xbf16>, vector<2x512xf32> -> vector<2x512xf32>
    %c0_5 = arith.constant 0 : index
    %c0_6 = arith.constant 0 : index
    %6 = vector.load %arg4[%c0_5, %c0_6] : memref<32x512xbf16, #tpu.memory_space<vmem>>, vector<32x512xbf16>
    %cst_7 = arith.constant dense<0.000000e+00> : vector<2x512xf32>
    %7 = tpu.matmul %3, %6, %cst_7 {dimension_numbers = #tpu.dot_dimension_numbers<[1], [0], [0], [1], [0, 0, 1, 1], [], []>} : vector<2x32xbf16>, vector<32x512xbf16>, vector<2x512xf32> -> vector<2x512xf32>
    %8 = arith.addf %5, %7 : vector<2x512xf32>
    %c0_8 = arith.constant 0 : index
    %c0_9 = arith.constant 0 : index
    %9 = vector.load %arg5[%c0_8, %c0_9] : memref<1x512xf32, #tpu.memory_space<vmem>>, vector<1x512xf32>
    %10 = vector.broadcast %9 : vector<1x512xf32> to vector<2x512xf32>
    %11 = arith.addf %8, %10 : vector<2x512xf32>
    %12 = arith.truncf %11 : vector<2x512xf32> to vector<2x512xbf16>
    %cst_10 = arith.constant 2.001950e-01 : bf16
    %13 = vector.broadcast %cst_10 : bf16 to vector<2x512xbf16>
    %14 = arith.mulf %13, %12 : vector<2x512xbf16>
    %15 = arith.maximumf %12, %14 : vector<2x512xbf16>
    %c0_11 = arith.constant 0 : index
    %c0_12 = arith.constant 0 : index
    %16 = vector.load %arg6[%c0_11, %c0_12] : memref<512x512xbf16, #tpu.memory_space<vmem>>, vector<512x512xbf16>
    %cst_13 = arith.constant dense<0.000000e+00> : vector<2x512xf32>
    %17 = tpu.matmul %15, %16, %cst_13 {dimension_numbers = #tpu.dot_dimension_numbers<[1], [0], [0], [1], [0, 0, 1, 1], [], []>} : vector<2x512xbf16>, vector<512x512xbf16>, vector<2x512xf32> -> vector<2x512xf32>
    %c0_14 = arith.constant 0 : index
    %c0_15 = arith.constant 0 : index
    %18 = vector.load %arg7[%c0_14, %c0_15] : memref<1x512xf32, #tpu.memory_space<vmem>>, vector<1x512xf32>
    %19 = vector.broadcast %18 : vector<1x512xf32> to vector<2x512xf32>
    %20 = arith.addf %17, %19 : vector<2x512xf32>
    %21 = arith.truncf %20 : vector<2x512xf32> to vector<2x512xbf16>
    %cst_16 = arith.constant 2.001950e-01 : bf16
    %22 = vector.broadcast %cst_16 : bf16 to vector<2x512xbf16>
    %23 = arith.mulf %22, %21 : vector<2x512xbf16>
    %24 = arith.maximumf %21, %23 : vector<2x512xbf16>
    %c0_17 = arith.constant 0 : index
    %c0_18 = arith.constant 0 : index
    %25 = vector.load %arg8[%c0_17, %c0_18] : memref<512x128xbf16, #tpu.memory_space<vmem>>, vector<512x128xbf16>
    %cst_19 = arith.constant dense<0.000000e+00> : vector<2x128xf32>
    %26 = tpu.matmul %24, %25, %cst_19 {dimension_numbers = #tpu.dot_dimension_numbers<[1], [0], [0], [1], [0, 0, 1, 1], [], []>} : vector<2x512xbf16>, vector<512x128xbf16>, vector<2x128xf32> -> vector<2x128xf32>
    %c0_20 = arith.constant 0 : index
    %c0_21 = arith.constant 0 : index
    %27 = vector.load %arg9[%c0_20, %c0_21] : memref<1x1xf32, #tpu.memory_space<vmem>>, vector<1x1xf32>
    %28 = vector.broadcast %27 : vector<1x1xf32> to vector<2x128xf32>
    %29 = arith.addf %26, %28 : vector<2x128xf32>
    %c0_22 = arith.constant 0 : index
    %c0_23 = arith.constant 0 : index
    %30 = vector.load %arg10[%c0_22, %c0_23] : memref<2x128xf32, #tpu.memory_space<vmem>>, vector<2x128xf32>
    tpu.vector_store %arg10[%c0_22, %c0_23], %29 {strides = array<i32>} : memref<2x128xf32, #tpu.memory_space<vmem>>, vector<2x128xf32>,
    return
  }
  func.func @transform_0(%arg0: i32) -> (i32, i32) {
    %c0_i32 = arith.constant 0 : i32
    %c0_i32_0 = arith.constant 0 : i32
    return %arg0, %c0_i32 : i32, i32
  }
  func.func @transform_1(%arg0: i32) -> (i32, i32) {
    %c0_i32 = arith.constant 0 : i32
    %c0_i32_0 = arith.constant 0 : i32
    return %arg0, %c0_i32 : i32, i32
  }
  func.func @transform_2(%arg0: i32) -> (i32, i32) {
    %c0_i32 = arith.constant 0 : i32
    %c0_i32_0 = arith.constant 0 : i32
    %c0_i32_1 = arith.constant 0 : i32
    return %c0_i32, %c0_i32_0 : i32, i32
  }
  func.func @transform_3(%arg0: i32) -> (i32, i32) {
    %c0_i32 = arith.constant 0 : i32
    %c0_i32_0 = arith.constant 0 : i32
    %c0_i32_1 = arith.constant 0 : i32
    return %c0_i32, %c0_i32_0 : i32, i32
  }
  func.func @transform_4(%arg0: i32) -> (i32, i32) {
    %c0_i32 = arith.constant 0 : i32
    %c0_i32_0 = arith.constant 0 : i32
    %c0_i32_1 = arith.constant 0 : i32
    return %c0_i32, %c0_i32_0 : i32, i32
  }
  func.func @transform_5(%arg0: i32) -> (i32, i32) {
    %c0_i32 = arith.constant 0 : i32
    %c0_i32_0 = arith.constant 0 : i32
    %c0_i32_1 = arith.constant 0 : i32
    return %c0_i32, %c0_i32_0 : i32, i32
  }
  func.func @transform_6(%arg0: i32) -> (i32, i32) {
    %c0_i32 = arith.constant 0 : i32
    %c0_i32_0 = arith.constant 0 : i32
    %c0_i32_1 = arith.constant 0 : i32
    return %c0_i32, %c0_i32_0 : i32, i32
  }
  func.func @transform_7(%arg0: i32) -> (i32, i32) {
    %c0_i32 = arith.constant 0 : i32
    %c0_i32_0 = arith.constant 0 : i32
    %c0_i32_1 = arith.constant 0 : i32
    return %c0_i32, %c0_i32_0 : i32, i32
  }
  func.func @transform_8(%arg0: i32) -> (i32, i32) {
    %c0_i32 = arith.constant 0 : i32
    %c0_i32_0 = arith.constant 0 : i32
    %c0_i32_1 = arith.constant 0 : i32
    return %c0_i32, %c0_i32_0 : i32, i32
  }
  func.func @transform_9(%arg0: i32) -> (i32, i32) {
    %c0_i32 = arith.constant 0 : i32
    %c0_i32_0 = arith.constant 0 : i32
    return %arg0, %c0_i32 : i32, i32
  }
}

</mosaic_0001>

<llo_original>
// kernel: tpu_custom_call.1
$region0: #{tpu_custom_call.1}
  #allocation0 [shape = 'u32[]', space=smem, size = 0x4, offset = 0x4, fixed_abs, tag = 'smem constant byte address 0x4 - core index']
  #allocation1 [shape = 'u32[144,128]{1,0:T(1,128)}', space=vmem, size = 0x12000, scoped, tag = 'internal scratch']
  #allocation2 [shape = 'f32[1,1]{1,0:T(1,128)S(1)}', space=vmem, size = 0x200, scoped, tag = 'scoped memory for tpu_custom_call.1']
  %s0 = inlined_call_operand.hbm [shape: f32[2,256], index: 0, kind: input, shape index: {}]
  %s1 = inlined_call_operand.hbm [shape: f32[2,32], index: 1, kind: input, shape index: {}]
  %s2 = inlined_call_operand.hbm [shape: bf16[256,512], index: 2, kind: input, shape index: {}]
  %s3 = inlined_call_operand.hbm [shape: bf16[32,512], index: 3, kind: input, shape index: {}]
  %s4 = inlined_call_operand.vmem [shape: f32[1,512], index: 4, kind: input, shape index: {}]
  %s5 = inlined_call_operand.hbm [shape: bf16[512,512], index: 5, kind: input, shape index: {}]
  %s6 = inlined_call_operand.vmem [shape: f32[1,512], index: 6, kind: input, shape index: {}]
  %s7 = inlined_call_operand.hbm [shape: bf16[512,128], index: 7, kind: input, shape index: {}]
  %s8 = inlined_call_operand.<no memory space> [shape: f32[1,1], index: 8, kind: input, shape index: {}]
  %s9 = inlined_call_operand.hbm [shape: f32[2,128], index: 9, kind: output, shape index: {}]
  %s10 = sld [smem:[#allocation0]]
  $region70: #{tpu_custom_call.1} parent=0
    _
  %s12 = ssub.s32 1, %s10
  %s13 = scalar_select 0, %s12, %s10
  %v14 = vstv %s8
  %15 = vst [vmem:[#allocation2] sm:$0x1] %v14
  $region1: #{tpu_custom_call.1} parent=0
    #allocation3 [shape = 'u8[2048]{0}', space=vmem, size = 0x800, scoped, tag = 'input window, operand 0, single buffered']
    #allocation4 [shape = 's32[1]{0}', space=sflag, size = 0x4, scoped, tag = 'scoped memory for tpu_custom_call.1']
    #allocation5 [shape = 's32[1]{0}', space=sflag, size = 0x4, scoped, tag = 'scoped memory for tpu_custom_call.1']
    #allocation6 [shape = 'u8[1024]{0}', space=vmem, size = 0x400, scoped, tag = 'input window, operand 1, single buffered']
    #allocation7 [shape = 's32[1]{0}', space=sflag, size = 0x4, scoped, tag = 'scoped memory for tpu_custom_call.1']
    #allocation8 [shape = 'u8[262144]{0}', space=vmem, size = 0x40000, scoped, tag = 'input window, operand 2, single buffered']
    #allocation9 [shape = 'u8[32768]{0}', space=vmem, size = 0x8000, scoped, tag = 'input window, operand 3, single buffered']
    #allocation10 [shape = 's32[1]{0}', space=sflag, size = 0x4, scoped, tag = 'scoped memory for tpu_custom_call.1']
    #allocation11 [shape = 'u8[524288]{0}', space=vmem, size = 0x80000, scoped, tag = 'input window, operand 5, single buffered']
    #allocation12 [shape = 'u8[131072]{0}', space=vmem, size = 0x20000, scoped, tag = 'input window, operand 7, single buffered']
    #allocation13 [shape = 's32[1]{0}', space=sflag, size = 0x4, scoped, tag = 'scoped memory for tpu_custom_call.1']
    #allocation14 [shape = 'u8[1024]{0}', space=vmem, size = 0x400, scoped, tag = 'output window, operand 0, single buffered']
    %16 = vsyncpa [#allocation4], 0
    %17 = vsyncpa [#allocation7], 0
    %18 = vsyncpa [#allocation10], 0
    %19 = vsyncpa [#allocation13], 0
    %20 = vsyncpa [#allocation5], 0
    // Predicated region
    $region2: #{tpu_custom_call.1} parent=1 // pred_check
      _
    $region3: #{tpu_custom_call.1} parent=1 // pred_check_branch
      %22 = sbr.rel (0) target = $region5
    $region4: #{tpu_custom_call.1} parent=1 // pred_region
      %s24 = ssub.s32 64, 64
      %25 = vsyncadd [#allocation4], %s24
      %s27 = sshll.u32 [#allocation3], 4
      %s28 = int_to_ptr.vmem [resolvable:$true] %s27
      %30 = dma.hbm_to_vmem [thread:$0]  %s0, 64, %s28, [#allocation4]
    $region5: #{tpu_custom_call.1} parent=1 // pred_fallthru
      _
    // Predicated region
    $region6: #{tpu_custom_call.1} parent=1 // pred_check
      _
    $region7: #{tpu_custom_call.1} parent=1 // pred_check_branch
      %32 = sbr.rel (0) target = $region9
    $region8: #{tpu_custom_call.1} parent=1 // pred_region
      %s34 = ssub.s32 32, 32
      %35 = vsyncadd [#allocation7], %s34
      %s37 = sshll.u32 [#allocation6], 4
      %s38 = int_to_ptr.vmem [resolvable:$true] %s37
      %40 = dma.hbm_to_vmem [thread:$0]  %s1, 32, %s38, [#allocation7]
    $region9: #{tpu_custom_call.1} parent=1 // pred_fallthru
      _
    // Predicated region
    $region10: #{tpu_custom_call.1} parent=1 // pred_check
      _
    $region11: #{tpu_custom_call.1} parent=1 // pred_check_branch
      %42 = sbr.rel (0) target = $region13
    $region12: #{tpu_custom_call.1} parent=1 // pred_region
      %s44 = ssub.s32 8192, 8192
      %45 = vsyncadd [#allocation7], %s44
      %s46 = sshll.u32 [#allocation8], 4
      %s47 = int_to_ptr.vmem [resolvable:$true] %s46
      %52 = dma.hbm_to_vmem [thread:$0]  %s2, 8192, %s47, [#allocation7], 256, 256, 16
    $region13: #{tpu_custom_call.1} parent=1 // pred_fallthru
      _
    // Predicated region
    $region14: #{tpu_custom_call.1} parent=1 // pred_check
      _
    $region15: #{tpu_custom_call.1} parent=1 // pred_check_branch
      %54 = sbr.rel (0) target = $region17
    $region16: #{tpu_custom_call.1} parent=1 // pred_region
      %s56 = ssub.s32 1024, 1024
      %57 = vsyncadd [#allocation10], %s56
      %s58 = sshll.u32 [#allocation9], 4
      %s59 = int_to_ptr.vmem [resolvable:$true] %s58
      %64 = dma.hbm_to_vmem [thread:$0]  %s3, 1024, %s59, [#allocation10], 256, 256, 16
    $region17: #{tpu_custom_call.1} parent=1 // pred_fallthru
      _
    // Predicated region
    $region18: #{tpu_custom_call.1} parent=1 // pred_check
      _
    $region19: #{tpu_custom_call.1} parent=1 // pred_check_branch
      %66 = sbr.rel (0) target = $region21
    $region20: #{tpu_custom_call.1} parent=1 // pred_region
      _
    $region21: #{tpu_custom_call.1} parent=1 // pred_fallthru
      _
    // Predicated region
    $region22: #{tpu_custom_call.1} parent=1 // pred_check
      _
    $region23: #{tpu_custom_call.1} parent=1 // pred_check_branch
      %68 = sbr.rel (0) target = $region25
    $region24: #{tpu_custom_call.1} parent=1 // pred_region
      %s70 = ssub.s32 16384, 16384
      %71 = vsyncadd [#allocation10], %s70
      %s72 = sshll.u32 [#allocation11], 4
      %s73 = int_to_ptr.vmem [resolvable:$true] %s72
      %78 = dma.hbm_to_vmem [thread:$0]  %s5, 16384, %s73, [#allocation10], 256, 256, 16
    $region25: #{tpu_custom_call.1} parent=1 // pred_fallthru
      _
    // Predicated region
    $region26: #{tpu_custom_call.1} parent=1 // pred_check
      _
    $region27: #{tpu_custom_call.1} parent=1 // pred_check_branch
      %80 = sbr.rel (0) target = $region29
    $region28: #{tpu_custom_call.1} parent=1 // pred_region
      _
    $region29: #{tpu_custom_call.1} parent=1 // pred_fallthru
      _
    // Predicated region
    $region30: #{tpu_custom_call.1} parent=1 // pred_check
      _
    $region31: #{tpu_custom_call.1} parent=1 // pred_check_branch
      %82 = sbr.rel (0) target = $region33
    $region32: #{tpu_custom_call.1} parent=1 // pred_region
      %s84 = ssub.s32 4096, 4096
      %85 = vsyncadd [#allocation13], %s84
      %s86 = sshll.u32 [#allocation12], 4
      %s87 = int_to_ptr.vmem [resolvable:$true] %s86
      %92 = dma.hbm_to_vmem [thread:$0]  %s7, 4096, %s87, [#allocation13], 64, 64, 4
    $region33: #{tpu_custom_call.1} parent=1 // pred_fallthru
      _
    // Predicated region
    $region34: #{tpu_custom_call.1} parent=1 // pred_check
      _
    $region35: #{tpu_custom_call.1} parent=1 // pred_check_branch
      %94 = sbr.rel (0) target = $region37
    $region36: #{tpu_custom_call.1} parent=1 // pred_region
      _
    $region37: #{tpu_custom_call.1} parent=1 // pred_fallthru
      _
    // Predicated region
    $region38: #{tpu_custom_call.1} parent=1 // pred_check
      _
    $region39: #{tpu_custom_call.1} parent=1 // pred_check_branch
      %96 = sbr.rel (0) target = $region41
    $region40: #{tpu_custom_call.1} parent=1 // pred_region
      %97 = dma.done [#allocation4], 64
    $region41: #{tpu_custom_call.1} parent=1 // pred_fallthru
      _
    // Predicated region
    $region42: #{tpu_custom_call.1} parent=1 // pred_check
      _
    $region43: #{tpu_custom_call.1} parent=1 // pred_check_branch
      %99 = sbr.rel (0) target = $region45
    $region44: #{tpu_custom_call.1} parent=1 // pred_region
      %100 = dma.done [#allocation7], 32
    $region45: #{tpu_custom_call.1} parent=1 // pred_fallthru
      _
    // Predicated region
    $region46: #{tpu_custom_call.1} parent=1 // pred_check
      _
    $region47: #{tpu_custom_call.1} parent=1 // pred_check_branch
      %102 = sbr.rel (0) target = $region49
    $region48: #{tpu_custom_call.1} parent=1 // pred_region
      %103 = dma.done [#allocation7], 8192
    $region49: #{tpu_custom_call.1} parent=1 // pred_fallthru
      _
    // Predicated region
    $region50: #{tpu_custom_call.1} parent=1 // pred_check
      _
    $region51: #{tpu_custom_call.1} parent=1 // pred_check_branch
      %105 = sbr.rel (0) target = $region53
    $region52: #{tpu_custom_call.1} parent=1 // pred_region
      %106 = dma.done [#allocation10], 1024
    $region53: #{tpu_custom_call.1} parent=1 // pred_fallthru
      _
    // Predicated region
    $region54: #{tpu_custom_call.1} parent=1 // pred_check
      _
    $region55: #{tpu_custom_call.1} parent=1 // pred_check_branch
      %108 = sbr.rel (0) target = $region57
    $region56: #{tpu_custom_call.1} parent=1 // pred_region
      %109 = dma.done [#allocation10], 16384
    $region57: #{tpu_custom_call.1} parent=1 // pred_fallthru
      _
    // Predicated region
    $region58: #{tpu_custom_call.1} parent=1 // pred_check
      _
    $region59: #{tpu_custom_call.1} parent=1 // pred_check_branch
      %111 = sbr.rel (0) target = $region61
    $region60: #{tpu_custom_call.1} parent=1 // pred_region
      %112 = dma.done [#allocation13], 4096
    $region61: #{tpu_custom_call.1} parent=1 // pred_fallthru
      _
    %v115 = vld [vmem:[#allocation3] sm:$0xf]
    %v118 = vunpack.c.l.s4 1983009808
    %v119 = vunpack.c.0.s8 %v118
    %v120 = vlaneseq
    %v121 = vshrl.u32 %v120, 7
    %v122 = vsub.s32 %v119, %v121
    %v123 = vrot.slane %v115, %v122
    %v124 = vcombine.high %v123, %v123
    %v127 = vpack.c.bf16 %v123, %v123
    %v128 = vpack.c.bf16 %v124, %v124
    %v129 = vld [vmem:[#allocation6] sm:$0x3]
    %v130 = vpack.c.bf16 %v129, %v129
    %v131 = vld [vmem:[#allocation8] sm:$0xff]
    %v132 = vld [vmem:[#allocation8 + $0x8] sm:$0xff]
    %v133 = vld [vmem:[#allocation8 + $0x10] sm:$0xff]
    %v134 = vld [vmem:[#allocation8 + $0x18] sm:$0xff]
    %v135 = vld [vmem:[#allocation8 + $0x20] sm:$0xff]
    %v136 = vld [vmem:[#allocation8 + $0x28] sm:$0xff]
    %v137 = vld [vmem:[#allocation8 + $0x30] sm:$0xff]
    %v138 = vld [vmem:[#allocation8 + $0x38] sm:$0xff]
    %v139 = vld [vmem:[#allocation8 + $0x40] sm:$0xff]
    %v140 = vld [vmem:[#allocation8 + $0x48] sm:$0xff]
    %v141 = vld [vmem:[#allocation8 + $0x50] sm:$0xff]
    %v142 = vld [vmem:[#allocation8 + $0x58] sm:$0xff]
    %v143 = vld [vmem:[#allocation8 + $0x60] sm:$0xff]
    %v144 = vld [vmem:[#allocation8 + $0x68] sm:$0xff]
    %v145 = vld [vmem:[#allocation8 + $0x70] sm:$0xff]
    %v146 = vld [vmem:[#allocation8 + $0x78] sm:$0xff]
    %v147 = vld [vmem:[#allocation8 + $0x80] sm:$0xff]
    %v148 = vld [vmem:[#allocation8 + $0x88] sm:$0xff]
    %v149 = vld [vmem:[#allocation8 + $0x90] sm:$0xff]
    %v150 = vld [vmem:[#allocation8 + $0x98] sm:$0xff]
    %v151 = vld [vmem:[#allocation8 + $0xa0] sm:$0xff]
    %v152 = vld [vmem:[#allocation8 + $0xa8] sm:$0xff]
    %v153 = vld [vmem:[#allocation8 + $0xb0] sm:$0xff]
    %v154 = vld [vmem:[#allocation8 + $0xb8] sm:$0xff]
    %v155 = vld [vmem:[#allocation8 + $0xc0] sm:$0xff]
    %v156 = vld [vmem:[#allocation8 + $0xc8] sm:$0xff]
    %v157 = vld [vmem:[#allocation8 + $0xd0] sm:$0xff]
    %v158 = vld [vmem:[#allocation8 + $0xd8] sm:$0xff]
    %v159 = vld [vmem:[#allocation8 + $0xe0] sm:$0xff]
    %v160 = vld [vmem:[#allocation8 + $0xe8] sm:$0xff]
    %v161 = vld [vmem:[#allocation8 + $0xf0] sm:$0xff]
    %v162 = vld [vmem:[#allocation8 + $0xf8] sm:$0xff]
    %v163 = vld [vmem:[#allocation8 + $0x100] sm:$0xff]
    %v164 = vld [vmem:[#allocation8 + $0x108] sm:$0xff]
    %v165 = vld [vmem:[#allocation8 + $0x110] sm:$0xff]
    %v166 = vld [vmem:[#allocation8 + $0x118] sm:$0xff]
    %v167 = vld [vmem:[#allocation8 + $0x120] sm:$0xff]
    %v168 = vld [vmem:[#allocation8 + $0x128] sm:$0xff]
    %v169 = vld [vmem:[#allocation8 + $0x130] sm:$0xff]
    %v170 = vld [vmem:[#allocation8 + $0x138] sm:$0xff]
    %v171 = vld [vmem:[#allocation8 + $0x140] sm:$0xff]
    %v172 = vld [vmem:[#allocation8 + $0x148] sm:$0xff]
    %v173 = vld [vmem:[#allocation8 + $0x150] sm:$0xff]
    %v174 = vld [vmem:[#allocation8 + $0x158] sm:$0xff]
    %v175 = vld [vmem:[#allocation8 + $0x160] sm:$0xff]
    %v176 = vld [vmem:[#allocation8 + $0x168] sm:$0xff]
    %v177 = vld [vmem:[#allocation8 + $0x170] sm:$0xff]
    %v178 = vld [vmem:[#allocation8 + $0x178] sm:$0xff]
    %v179 = vld [vmem:[#allocation8 + $0x180] sm:$0xff]
    %v180 = vld [vmem:[#allocation8 + $0x188] sm:$0xff]
    %v181 = vld [vmem:[#allocation8 + $0x190] sm:$0xff]
    %v182 = vld [vmem:[#allocation8 + $0x198] sm:$0xff]
    %v183 = vld [vmem:[#allocation8 + $0x1a0] sm:$0xff]
    %v184 = vld [vmem:[#allocation8 + $0x1a8] sm:$0xff]
    %v185 = vld [vmem:[#allocation8 + $0x1b0] sm:$0xff]
    %v186 = vld [vmem:[#allocation8 + $0x1b8] sm:$0xff]
    %v187 = vld [vmem:[#allocation8 + $0x1c0] sm:$0xff]
    %v188 = vld [vmem:[#allocation8 + $0x1c8] sm:$0xff]
    %v189 = vld [vmem:[#allocation8 + $0x1d0] sm:$0xff]
    %v190 = vld [vmem:[#allocation8 + $0x1d8] sm:$0xff]
    %v191 = vld [vmem:[#allocation8 + $0x1e0] sm:$0xff]
    %v192 = vld [vmem:[#allocation8 + $0x1e8] sm:$0xff]
    %v193 = vld [vmem:[#allocation8 + $0x1f0] sm:$0xff]
    %v194 = vld [vmem:[#allocation8 + $0x1f8] sm:$0xff]
    %v195 = vld [vmem:[#allocation9] sm:$0xff]
    %v196 = vld [vmem:[#allocation9 + $0x8] sm:$0xff]
    %v197 = vld [vmem:[#allocation9 + $0x10] sm:$0xff]
    %v198 = vld [vmem:[#allocation9 + $0x18] sm:$0xff]
    %v199 = vld [vmem:[#allocation9 + $0x20] sm:$0xff]
    %v200 = vld [vmem:[#allocation9 + $0x28] sm:$0xff]
    %v201 = vld [vmem:[#allocation9 + $0x30] sm:$0xff]
    %v202 = vld [vmem:[#allocation9 + $0x38] sm:$0xff]
    %v211 = vunpack.c.l.b16 %v195
    %v212 = vunpack.c.h.b16 %v195
    %v213 = vunpack.c.l.b16 %v196
    %v214 = vunpack.c.h.b16 %v196
    %v215 = vunpack.c.l.b16 %v197
    %v216 = vunpack.c.h.b16 %v197
    %v217 = vunpack.c.l.b16 %v198
    %v218 = vunpack.c.h.b16 %v198
    %v219 = vunpack.c.l.b16 %v199
    %v220 = vunpack.c.h.b16 %v199
    %v221 = vunpack.c.l.b16 %v200
    %v222 = vunpack.c.h.b16 %v200
    %v223 = vunpack.c.l.b16 %v201
    %v224 = vunpack.c.h.b16 %v201
    %v225 = vunpack.c.l.b16 %v202
    %v226 = vunpack.c.h.b16 %v202
    %v227 = vpack.c.b16 %v215, %v211
    %v228 = vpack.c.b16 %v216, %v212
    %v229 = vpack.c.b16 %v217, %v213
    %v230 = vpack.c.b16 %v218, %v214
    %v231 = vpack.c.b16 %v223, %v219
    %v232 = vpack.c.b16 %v224, %v220
    %v233 = vpack.c.b16 %v225, %v221
    %v234 = vpack.c.b16 %v226, %v222
    %vm243 = vcmask 261120
    %v245 = vsel %vm243, %v130, 0
    %247 = vmatprep.subr.bf16.mxu0 0
    %248 = vmatpush1.bf16.msra.mxu0 0
    %249 = vmatprep.subr.bf16.mxu0 0
    %250 = vmatpush1.bf16.msra.mxu0 0
    %251 = vmatprep.subr.bf16.mxu0 0
    %252 = vmatpush1.bf16.msra.mxu0 0
    %253 = vmatprep.subr.bf16.mxu0 0
    %254 = vmatpush1.bf16.msra.mxu0 0
    %255 = vmatprep.subr.bf16.mxu0 0
    %256 = vmatpush1.bf16.msra.mxu0 0
    %257 = vmatprep.subr.bf16.mxu0 0
    %258 = vmatpush1.bf16.msra.mxu0 0
    %259 = vmatprep.subr.bf16.mxu0 %v232
    %260 = vmatpush1.bf16.msra.mxu0 %v231
    %261 = vmatprep.subr.bf16.mxu0 %v228
    %262 = vmatpush1.bf16.msra.mxu0 %v227
    %263 = vmatprep.subr.bf16.mxu0 0
    %264 = vmatpush2.bf16.msra.mxu0 0
    %265 = vmatprep.subr.bf16.mxu0 0
    %266 = vmatpush2.bf16.msra.mxu0 0
    %267 = vmatprep.subr.bf16.mxu0 0
    %268 = vmatpush2.bf16.msra.mxu0 0
    %269 = vmatprep.subr.bf16.mxu0 0
    %270 = vmatpush2.bf16.msra.mxu0 0
    %271 = vmatprep.subr.bf16.mxu0 0
    %272 = vmatpush2.bf16.msra.mxu0 0
    %273 = vmatprep.subr.bf16.mxu0 0
    %274 = vmatpush2.bf16.msra.mxu0 0
    %275 = vmatprep.subr.bf16.mxu0 0
    %276 = vmatpush2.bf16.msra.mxu0 0
    %277 = vmatprep.subr.bf16.mxu0 0
    %278 = vmatpush2.bf16.msra.mxu0 0
    %279 = vmatprep.mubr.bf16.mxu0 0
    %280 = vmatmul.mubr.bf16.gmra.mxu0 %v245
    %v281 = vpop.f32.mrf.mxu0
    %v282 = vadd.f32 0.0, %v281
    %v283 = vpop.f32.mrf.mxu0
    %v284 = vadd.f32 0.0, %v283
    %v285 = vpop.f32.mrf.mxu0
    %v286 = vpop.f32.mrf.mxu0
    %287 = vdwg.mxu0
    %288 = vmatprep.subr.bf16.mxu0 0
    %289 = vmatpush1.bf16.msra.mxu0 0
    %290 = vmatprep.subr.bf16.mxu0 0
    %291 = vmatpush1.bf16.msra.mxu0 0
    %292 = vmatprep.subr.bf16.mxu0 0
    %293 = vmatpush1.bf16.msra.mxu0 0
    %294 = vmatprep.subr.bf16.mxu0 0
    %295 = vmatpush1.bf16.msra.mxu0 0
    %296 = vmatprep.subr.bf16.mxu0 0
    %297 = vmatpush1.bf16.msra.mxu0 0
    %298 = vmatprep.subr.bf16.mxu0 0
    %299 = vmatpush1.bf16.msra.mxu0 0
    %300 = vmatprep.subr.bf16.mxu0 %v234
    %301 = vmatpush1.bf16.msra.mxu0 %v233
    %302 = vmatprep.subr.bf16.mxu0 %v230
    %303 = vmatpush1.bf16.msra.mxu0 %v229
    %304 = vmatprep.subr.bf16.mxu0 0
    %305 = vmatpush2.bf16.msra.mxu0 0
    %306 = vmatprep.subr.bf16.mxu0 0
    %307 = vmatpush2.bf16.msra.mxu0 0
    %308 = vmatprep.subr.bf16.mxu0 0
    %309 = vmatpush2.bf16.msra.mxu0 0
    %310 = vmatprep.subr.bf16.mxu0 0
    %311 = vmatpush2.bf16.msra.mxu0 0
    %312 = vmatprep.subr.bf16.mxu0 0
    %313 = vmatpush2.bf16.msra.mxu0 0
    %314 = vmatprep.subr.bf16.mxu0 0
    %315 = vmatpush2.bf16.msra.mxu0 0
    %316 = vmatprep.subr.bf16.mxu0 0
    %317 = vmatpush2.bf16.msra.mxu0 0
    %318 = vmatprep.subr.bf16.mxu0 0
    %319 = vmatpush2.bf16.msra.mxu0 0
    %320 = vmatprep.mubr.bf16.mxu0 0
    %321 = vmatmul.mubr.bf16.gmra.mxu0 %v245
    %v322 = vpop.f32.mrf.mxu0
    %v323 = vadd.f32 0.0, %v322
    %v324 = vpop.f32.mrf.mxu0
    %v325 = vadd.f32 0.0, %v324
    %v326 = vpop.f32.mrf.mxu0
    %v327 = vpop.f32.mrf.mxu0
    %328 = vdwg.mxu0
    %v393 = vunpack.c.l.b16 %v131
    %v394 = vunpack.c.h.b16 %v131
    %v395 = vunpack.c.l.b16 %v132
    %v396 = vunpack.c.h.b16 %v132
    %v397 = vunpack.c.l.b16 %v133
    %v398 = vunpack.c.h.b16 %v133
    %v399 = vunpack.c.l.b16 %v134
    %v400 = vunpack.c.h.b16 %v134
    %v401 = vunpack.c.l.b16 %v135
    %v402 = vunpack.c.h.b16 %v135
    %v403 = vunpack.c.l.b16 %v136
    %v404 = vunpack.c.h.b16 %v136
    %v405 = vunpack.c.l.b16 %v137
    %v406 = vunpack.c.h.b16 %v137
    %v407 = vunpack.c.l.b16 %v138
    %v408 = vunpack.c.h.b16 %v138
    %v409 = vunpack.c.l.b16 %v139
    %v410 = vunpack.c.h.b16 %v139
    %v411 = vunpack.c.l.b16 %v140
    %v412 = vunpack.c.h.b16 %v140
    %v413 = vunpack.c.l.b16 %v141
    %v414 = vunpack.c.h.b16 %v141
    %v415 = vunpack.c.l.b16 %v142
    %v416 = vunpack.c.h.b16 %v142
    %v417 = vunpack.c.l.b16 %v143
    %v418 = vunpack.c.h.b16 %v143
    %v419 = vunpack.c.l.b16 %v144
    %v420 = vunpack.c.h.b16 %v144
    %v421 = vunpack.c.l.b16 %v145
    %v422 = vunpack.c.h.b16 %v145
    %v423 = vunpack.c.l.b16 %v146
    %v424 = vunpack.c.h.b16 %v146
    %v425 = vunpack.c.l.b16 %v147
    %v426 = vunpack.c.h.b16 %v147
    %v427 = vunpack.c.l.b16 %v148
    %v428 = vunpack.c.h.b16 %v148
    %v429 = vunpack.c.l.b16 %v149
    %v430 = vunpack.c.h.b16 %v149
    %v431 = vunpack.c.l.b16 %v150
    %v432 = vunpack.c.h.b16 %v150
    %v433 = vunpack.c.l.b16 %v151
    %v434 = vunpack.c.h.b16 %v151
    %v435 = vunpack.c.l.b16 %v152
    %v436 = vunpack.c.h.b16 %v152
    %v437 = vunpack.c.l.b16 %v153
    %v438 = vunpack.c.h.b16 %v153
    %v439 = vunpack.c.l.b16 %v154
    %v440 = vunpack.c.h.b16 %v154
    %v441 = vunpack.c.l.b16 %v155
    %v442 = vunpack.c.h.b16 %v155
    %v443 = vunpack.c.l.b16 %v156
    %v444 = vunpack.c.h.b16 %v156
    %v445 = vunpack.c.l.b16 %v157
    %v446 = vunpack.c.h.b16 %v157
    %v447 = vunpack.c.l.b16 %v158
    %v448 = vunpack.c.h.b16 %v158
    %v449 = vunpack.c.l.b16 %v159
    %v450 = vunpack.c.h.b16 %v159
    %v451 = vunpack.c.l.b16 %v160
    %v452 = vunpack.c.h.b16 %v160
    %v453 = vunpack.c.l.b16 %v161
    %v454 = vunpack.c.h.b16 %v161
    %v455 = vunpack.c.l.b16 %v162
    %v456 = vunpack.c.h.b16 %v162
    %v457 = vunpack.c.l.b16 %v163
    %v458 = vunpack.c.h.b16 %v163
    %v459 = vunpack.c.l.b16 %v164
    %v460 = vunpack.c.h.b16 %v164
    %v461 = vunpack.c.l.b16 %v165
    %v462 = vunpack.c.h.b16 %v165
    %v463 = vunpack.c.l.b16 %v166
    %v464 = vunpack.c.h.b16 %v166
    %v465 = vunpack.c.l.b16 %v167
    %v466 = vunpack.c.h.b16 %v167
    %v467 = vunpack.c.l.b16 %v168
    %v468 = vunpack.c.h.b16 %v168
    %v469 = vunpack.c.l.b16 %v169
    %v470 = vunpack.c.h.b16 %v169
    %v471 = vunpack.c.l.b16 %v170
    %v472 = vunpack.c.h.b16 %v170
    %v473 = vunpack.c.l.b16 %v171
    %v474 = vunpack.c.h.b16 %v171
    %v475 = vunpack.c.l.b16 %v172
    %v476 = vunpack.c.h.b16 %v172
    %v477 = vunpack.c.l.b16 %v173
    %v478 = vunpack.c.h.b16 %v173
    %v479 = vunpack.c.l.b16 %v174
    %v480 = vunpack.c.h.b16 %v174
    %v481 = vunpack.c.l.b16 %v175
    %v482 = vunpack.c.h.b16 %v175
    %v483 = vunpack.c.l.b16 %v176
    %v484 = vunpack.c.h.b16 %v176
    %v485 = vunpack.c.l.b16 %v177
    %v486 = vunpack.c.h.b16 %v177
    %v487 = vunpack.c.l.b16 %v178
    %v488 = vunpack.c.h.b16 %v178
    %v489 = vunpack.c.l.b16 %v179
    %v490 = vunpack.c.h.b16 %v179
    %v491 = vunpack.c.l.b16 %v180
    %v492 = vunpack.c.h.b16 %v180
    %v493 = vunpack.c.l.b16 %v181
    %v494 = vunpack.c.h.b16 %v181
    %v495 = vunpack.c.l.b16 %v182
    %v496 = vunpack.c.h.b16 %v182
    %v497 = vunpack.c.l.b16 %v183
    %v498 = vunpack.c.h.b16 %v183
    %v499 = vunpack.c.l.b16 %v184
    %v500 = vunpack.c.h.b16 %v184
    %v501 = vunpack.c.l.b16 %v185
    %v502 = vunpack.c.h.b16 %v185
    %v503 = vunpack.c.l.b16 %v186
    %v504 = vunpack.c.h.b16 %v186
    %v505 = vunpack.c.l.b16 %v187
    %v506 = vunpack.c.h.b16 %v187
    %v507 = vunpack.c.l.b16 %v188
    %v508 = vunpack.c.h.b16 %v188
    %v509 = vunpack.c.l.b16 %v189
    %v510 = vunpack.c.h.b16 %v189
    %v511 = vunpack.c.l.b16 %v190
    %v512 = vunpack.c.h.b16 %v190
    %v513 = vunpack.c.l.b16 %v191
    %v514 = vunpack.c.h.b16 %v191
    %v515 = vunpack.c.l.b16 %v192
    %v516 = vunpack.c.h.b16 %v192
    %v517 = vunpack.c.l.b16 %v193
    %v518 = vunpack.c.h.b16 %v193
    %v519 = vunpack.c.l.b16 %v194
    %v520 = vunpack.c.h.b16 %v194
    %v521 = vpack.c.b16 %v397, %v393
    %v522 = vpack.c.b16 %v398, %v394
    %v523 = vpack.c.b16 %v399, %v395
    %v524 = vpack.c.b16 %v400, %v396
    %v525 = vpack.c.b16 %v405, %v401
    %v526 = vpack.c.b16 %v406, %v402
    %v527 = vpack.c.b16 %v407, %v403
    %v528 = vpack.c.b16 %v408, %v404
    %v529 = vpack.c.b16 %v413, %v409
    %v530 = vpack.c.b16 %v414, %v410
    %v531 = vpack.c.b16 %v415, %v411
    %v532 = vpack.c.b16 %v416, %v412
    %v533 = vpack.c.b16 %v421, %v417
    %v534 = vpack.c.b16 %v422, %v418
    %v535 = vpack.c.b16 %v423, %v419
    %v536 = vpack.c.b16 %v424, %v420
    %v537 = vpack.c.b16 %v429, %v425
    %v538 = vpack.c.b16 %v430, %v426
    %v539 = vpack.c.b16 %v431, %v427
    %v540 = vpack.c.b16 %v432, %v428
    %v541 = vpack.c.b16 %v437, %v433
    %v542 = vpack.c.b16 %v438, %v434
    %v543 = vpack.c.b16 %v439, %v435
    %v544 = vpack.c.b16 %v440, %v436
    %v545 = vpack.c.b16 %v445, %v441
    %v546 = vpack.c.b16 %v446, %v442
    %v547 = vpack.c.b16 %v447, %v443
    %v548 = vpack.c.b16 %v448, %v444
    %v549 = vpack.c.b16 %v453, %v449
    %v550 = vpack.c.b16 %v454, %v450
    %v551 = vpack.c.b16 %v455, %v451
    %v552 = vpack.c.b16 %v456, %v452
    %v553 = vpack.c.b16 %v461, %v457
    %v554 = vpack.c.b16 %v462, %v458
    %v555 = vpack.c.b16 %v463, %v459
    %v556 = vpack.c.b16 %v464, %v460
    %v557 = vpack.c.b16 %v469, %v465
    %v558 = vpack.c.b16 %v470, %v466
    %v559 = vpack.c.b16 %v471, %v467
    %v560 = vpack.c.b16 %v472, %v468
    %v561 = vpack.c.b16 %v477, %v473
    %v562 = vpack.c.b16 %v478, %v474
    %v563 = vpack.c.b16 %v479, %v475
    %v564 = vpack.c.b16 %v480, %v476
    %v565 = vpack.c.b16 %v485, %v481
    %v566 = vpack.c.b16 %v486, %v482
    %v567 = vpack.c.b16 %v487, %v483
    %v568 = vpack.c.b16 %v488, %v484
    %v569 = vpack.c.b16 %v493, %v489
    %v570 = vpack.c.b16 %v494, %v490
    %v571 = vpack.c.b16 %v495, %v491
    %v572 = vpack.c.b16 %v496, %v492
    %v573 = vpack.c.b16 %v501, %v497
    %v574 = vpack.c.b16 %v502, %v498
    %v575 = vpack.c.b16 %v503, %v499
    %v576 = vpack.c.b16 %v504, %v500
    %v577 = vpack.c.b16 %v509, %v505
    %v578 = vpack.c.b16 %v510, %v506
    %v579 = vpack.c.b16 %v511, %v507
    %v580 = vpack.c.b16 %v512, %v508
    %v581 = vpack.c.b16 %v517, %v513
    %v582 = vpack.c.b16 %v518, %v514
    %v583 = vpack.c.b16 %v519, %v515
    %v584 = vpack.c.b16 %v520, %v516
    %649 = vmatprep.subr.bf16.mxu0 %v550
    %650 = vmatpush1.bf16.msra.mxu0 %v549
    %651 = vmatprep.subr.bf16.mxu0 %v546
    %652 = vmatpush1.bf16.msra.mxu0 %v545
    %653 = vmatprep.subr.bf16.mxu0 %v542
    %654 = vmatpush1.bf16.msra.mxu0 %v541
    %655 = vmatprep.subr.bf16.mxu0 %v538
    %656 = vmatpush1.bf16.msra.mxu0 %v537
    %657 = vmatprep.subr.bf16.mxu0 %v534
    %658 = vmatpush1.bf16.msra.mxu0 %v533
    %659 = vmatprep.subr.bf16.mxu0 %v530
    %660 = vmatpush1.bf16.msra.mxu0 %v529
    %661 = vmatprep.subr.bf16.mxu0 %v526
    %662 = vmatpush1.bf16.msra.mxu0 %v525
    %663 = vmatprep.subr.bf16.mxu0 %v522
    %664 = vmatpush1.bf16.msra.mxu0 %v521
    %665 = vmatprep.subr.bf16.mxu0 %v582
    %666 = vmatpush2.bf16.msra.mxu0 %v581
    %667 = vmatprep.subr.bf16.mxu0 %v578
    %668 = vmatpush2.bf16.msra.mxu0 %v577
    %669 = vmatprep.subr.bf16.mxu0 %v574
    %670 = vmatpush2.bf16.msra.mxu0 %v573
    %671 = vmatprep.subr.bf16.mxu0 %v570
    %672 = vmatpush2.bf16.msra.mxu0 %v569
    %673 = vmatprep.subr.bf16.mxu0 %v566
    %674 = vmatpush2.bf16.msra.mxu0 %v565
    %675 = vmatprep.subr.bf16.mxu0 %v562
    %676 = vmatpush2.bf16.msra.mxu0 %v561
    %677 = vmatprep.subr.bf16.mxu0 %v558
    %678 = vmatpush2.bf16.msra.mxu0 %v557
    %679 = vmatprep.subr.bf16.mxu0 %v554
    %680 = vmatpush2.bf16.msra.mxu0 %v553
    %681 = vmatprep.mubr.bf16.mxu0 %v128
    %682 = vmatmul.mubr.bf16.gmra.mxu0 %v127
    %v683 = vpop.f32.mrf.mxu0
    %v684 = vadd.f32 %v282, %v683
    %v685 = vpop.f32.mrf.mxu0
    %v686 = vadd.f32 %v284, %v685
    %v687 = vpop.f32.mrf.mxu0
    %v688 = vpop.f32.mrf.mxu0
    %689 = vdwg.mxu0
    %690 = vmatprep.subr.bf16.mxu0 %v552
    %691 = vmatpush1.bf16.msra.mxu0 %v551
    %692 = vmatprep.subr.bf16.mxu0 %v548
    %693 = vmatpush1.bf16.msra.mxu0 %v547
    %694 = vmatprep.subr.bf16.mxu0 %v544
    %695 = vmatpush1.bf16.msra.mxu0 %v543
    %696 = vmatprep.subr.bf16.mxu0 %v540
    %697 = vmatpush1.bf16.msra.mxu0 %v539
    %698 = vmatprep.subr.bf16.mxu0 %v536
    %699 = vmatpush1.bf16.msra.mxu0 %v535
    %700 = vmatprep.subr.bf16.mxu0 %v532
    %701 = vmatpush1.bf16.msra.mxu0 %v531
    %702 = vmatprep.subr.bf16.mxu0 %v528
    %703 = vmatpush1.bf16.msra.mxu0 %v527
    %704 = vmatprep.subr.bf16.mxu0 %v524
    %705 = vmatpush1.bf16.msra.mxu0 %v523
    %706 = vmatprep.subr.bf16.mxu0 %v584
    %707 = vmatpush2.bf16.msra.mxu0 %v583
    %708 = vmatprep.subr.bf16.mxu0 %v580
    %709 = vmatpush2.bf16.msra.mxu0 %v579
    %710 = vmatprep.subr.bf16.mxu0 %v576
    %711 = vmatpush2.bf16.msra.mxu0 %v575
    %712 = vmatprep.subr.bf16.mxu0 %v572
    %713 = vmatpush2.bf16.msra.mxu0 %v571
    %714 = vmatprep.subr.bf16.mxu0 %v568
    %715 = vmatpush2.bf16.msra.mxu0 %v567
    %716 = vmatprep.subr.bf16.mxu0 %v564
    %717 = vmatpush2.bf16.msra.mxu0 %v563
    %718 = vmatprep.subr.bf16.mxu0 %v560
    %719 = vmatpush2.bf16.msra.mxu0 %v559
    %720 = vmatprep.subr.bf16.mxu0 %v556
    %721 = vmatpush2.bf16.msra.mxu0 %v555
    %722 = vmatprep.mubr.bf16.mxu0 %v128
    %723 = vmatmul.mubr.bf16.gmra.mxu0 %v127
    %v724 = vpop.f32.mrf.mxu0
    %v725 = vadd.f32 %v323, %v724
    %v726 = vpop.f32.mrf.mxu0
    %v727 = vadd.f32 %v325, %v726
    %v728 = vpop.f32.mrf.mxu0
    %v729 = vpop.f32.mrf.mxu0
    %730 = vdwg.mxu0
    %v731 = vld [vmem:[%s4] sm:$0xf]
    %v733 = vlaneseq
    %v734 = vshrl.u32 %v733, 7
    %v735 = vsub.s32 0, %v734
    %v736 = vrot.slane %v731, %v735
    %v737 = vlaneseq
    %v738 = vshrl.u32 %v737, 7
    %v739 = vsub.s32 1, %v738
    %v740 = vrot.slane %v731, %v739
    %v741 = vlaneseq
    %v742 = vshrl.u32 %v741, 7
    %v743 = vsub.s32 2, %v742
    %v744 = vrot.slane %v731, %v743
    %v745 = vlaneseq
    %v746 = vshrl.u32 %v745, 7
    %v747 = vsub.s32 3, %v746
    %v748 = vrot.slane %v731, %v747
    %v753 = vadd.f32 %v684, %v736
    %v754 = vadd.f32 %v686, %v740
    %v755 = vadd.f32 %v725, %v744
    %v756 = vadd.f32 %v727, %v748
    %v757 = vpack.c.bf16 %v753, %v753
    %v758 = vpack.c.bf16 %v754, %v754
    %v759 = vpack.c.bf16 %v755, %v755
    %v760 = vpack.c.bf16 %v756, %v756
    %v761 = vmul.bf16 %v757, 1045249613
    %v762 = vmul.bf16 %v758, 1045249613
    %v763 = vmul.bf16 %v759, 1045249613
    %v764 = vmul.bf16 %v760, 1045249613
    %v765 = vmax.bf16 %v757, %v761
    %v766 = vmax.bf16 %v758, %v762
    %v767 = vmax.bf16 %v759, %v763
    %v768 = vmax.bf16 %v760, %v764
    %v769 = vld [vmem:[#allocation11] sm:$0xff]
    %v770 = vld [vmem:[#allocation11 + $0x8] sm:$0xff]
    %v771 = vld [vmem:[#allocation11 + $0x10] sm:$0xff]
    %v772 = vld [vmem:[#allocation11 + $0x18] sm:$0xff]
    %v773 = vld [vmem:[#allocation11 + $0x20] sm:$0xff]
    %v774 = vld [vmem:[#allocation11 + $0x28] sm:$0xff]
    %v775 = vld [vmem:[#allocation11 + $0x30] sm:$0xff]
    %v776 = vld [vmem:[#allocation11 + $0x38] sm:$0xff]
    %v777 = vld [vmem:[#allocation11 + $0x40] sm:$0xff]
    %v778 = vld [vmem:[#allocation11 + $0x48] sm:$0xff]
    %v779 = vld [vmem:[#allocation11 + $0x50] sm:$0xff]
    %v780 = vld [vmem:[#allocation11 + $0x58] sm:$0xff]
    %v781 = vld [vmem:[#allocation11 + $0x60] sm:$0xff]
    %v782 = vld [vmem:[#allocation11 + $0x68] sm:$0xff]
    %v783 = vld [vmem:[#allocation11 + $0x70] sm:$0xff]
    %v784 = vld [vmem:[#allocation11 + $0x78] sm:$0xff]
    %v785 = vld [vmem:[#allocation11 + $0x80] sm:$0xff]
    %v786 = vld [vmem:[#allocation11 + $0x88] sm:$0xff]
    %v787 = vld [vmem:[#allocation11 + $0x90] sm:$0xff]
    %v788 = vld [vmem:[#allocation11 + $0x98] sm:$0xff]
    %v789 = vld [vmem:[#allocation11 + $0xa0] sm:$0xff]
    %v790 = vld [vmem:[#allocation11 + $0xa8] sm:$0xff]
    %v791 = vld [vmem:[#allocation11 + $0xb0] sm:$0xff]
    %v792 = vld [vmem:[#allocation11 + $0xb8] sm:$0xff]
    %v793 = vld [vmem:[#allocation11 + $0xc0] sm:$0xff]
    %v794 = vld [vmem:[#allocation11 + $0xc8] sm:$0xff]
    %v795 = vld [vmem:[#allocation11 + $0xd0] sm:$0xff]
    %v796 = vld [vmem:[#allocation11 + $0xd8] sm:$0xff]
    %v797 = vld [vmem:[#allocation11 + $0xe0] sm:$0xff]
    %v798 = vld [vmem:[#allocation11 + $0xe8] sm:$0xff]
    %v799 = vld [vmem:[#allocation11 + $0xf0] sm:$0xff]
    %v800 = vld [vmem:[#allocation11 + $0xf8] sm:$0xff]
    %v801 = vld [vmem:[#allocation11 + $0x100] sm:$0xff]
    %v802 = vld [vmem:[#allocation11 + $0x108] sm:$0xff]
    %v803 = vld [vmem:[#allocation11 + $0x110] sm:$0xff]
    %v804 = vld [vmem:[#allocation11 + $0x118] sm:$0xff]
    %v805 = vld [vmem:[#allocation11 + $0x120] sm:$0xff]
    %v806 = vld [vmem:[#allocation11 + $0x128] sm:$0xff]
    %v807 = vld [vmem:[#allocation11 + $0x130] sm:$0xff]
    %v808 = vld [vmem:[#allocation11 + $0x138] sm:$0xff]
    %v809 = vld [vmem:[#allocation11 + $0x140] sm:$0xff]
    %v810 = vld [vmem:[#allocation11 + $0x148] sm:$0xff]
    %v811 = vld [vmem:[#allocation11 + $0x150] sm:$0xff]
    %v812 = vld [vmem:[#allocation11 + $0x158] sm:$0xff]
    %v813 = vld [vmem:[#allocation11 + $0x160] sm:$0xff]
    %v814 = vld [vmem:[#allocation11 + $0x168] sm:$0xff]
    %v815 = vld [vmem:[#allocation11 + $0x170] sm:$0xff]
    %v816 = vld [vmem:[#allocation11 + $0x178] sm:$0xff]
    %v817 = vld [vmem:[#allocation11 + $0x180] sm:$0xff]
    %v818 = vld [vmem:[#allocation11 + $0x188] sm:$0xff]
    %v819 = vld [vmem:[#allocation11 + $0x190] sm:$0xff]
    %v820 = vld [vmem:[#allocation11 + $0x198] sm:$0xff]
    %v821 = vld [vmem:[#allocation11 + $0x1a0] sm:$0xff]
    %v822 = vld [vmem:[#allocation11 + $0x1a8] sm:$0xff]
    %v823 = vld [vmem:[#allocation11 + $0x1b0] sm:$0xff]
    %v824 = vld [vmem:[#allocation11 + $0x1b8] sm:$0xff]
    %v825 = vld [vmem:[#allocation11 + $0x1c0] sm:$0xff]
    %v826 = vld [vmem:[#allocation11 + $0x1c8] sm:$0xff]
    %v827 = vld [vmem:[#allocation11 + $0x1d0] sm:$0xff]
    %v828 = vld [vmem:[#allocation11 + $0x1d8] sm:$0xff]
    %v829 = vld [vmem:[#allocation11 + $0x1e0] sm:$0xff]
    %v830 = vld [vmem:[#allocation11 + $0x1e8] sm:$0xff]
    %v831 = vld [vmem:[#allocation11 + $0x1f0] sm:$0xff]
    %v832 = vld [vmem:[#allocation11 + $0x1f8] sm:$0xff]
    %v833 = vld [vmem:[#allocation11 + $0x200] sm:$0xff]
    %v834 = vld [vmem:[#allocation11 + $0x208] sm:$0xff]
    %v835 = vld [vmem:[#allocation11 + $0x210] sm:$0xff]
    %v836 = vld [vmem:[#allocation11 + $0x218] sm:$0xff]
    %v837 = vld [vmem:[#allocation11 + $0x220] sm:$0xff]
    %v838 = vld [vmem:[#allocation11 + $0x228] sm:$0xff]
    %v839 = vld [vmem:[#allocation11 + $0x230] sm:$0xff]
    %v840 = vld [vmem:[#allocation11 + $0x238] sm:$0xff]
    %v841 = vld [vmem:[#allocation11 + $0x240] sm:$0xff]
    %v842 = vld [vmem:[#allocation11 + $0x248] sm:$0xff]
    %v843 = vld [vmem:[#allocation11 + $0x250] sm:$0xff]
    %v844 = vld [vmem:[#allocation11 + $0x258] sm:$0xff]
    %v845 = vld [vmem:[#allocation11 + $0x260] sm:$0xff]
    %v846 = vld [vmem:[#allocation11 + $0x268] sm:$0xff]
    %v847 = vld [vmem:[#allocation11 + $0x270] sm:$0xff]
    %v848 = vld [vmem:[#allocation11 + $0x278] sm:$0xff]
    %v849 = vld [vmem:[#allocation11 + $0x280] sm:$0xff]
    %v850 = vld [vmem:[#allocation11 + $0x288] sm:$0xff]
    %v851 = vld [vmem:[#allocation11 + $0x290] sm:$0xff]
    %v852 = vld [vmem:[#allocation11 + $0x298] sm:$0xff]
    %v853 = vld [vmem:[#allocation11 + $0x2a0] sm:$0xff]
    %v854 = vld [vmem:[#allocation11 + $0x2a8] sm:$0xff]
    %v855 = vld [vmem:[#allocation11 + $0x2b0] sm:$0xff]
    %v856 = vld [vmem:[#allocation11 + $0x2b8] sm:$0xff]
    %v857 = vld [vmem:[#allocation11 + $0x2c0] sm:$0xff]
    %v858 = vld [vmem:[#allocation11 + $0x2c8] sm:$0xff]
    %v859 = vld [vmem:[#allocation11 + $0x2d0] sm:$0xff]
    %v860 = vld [vmem:[#allocation11 + $0x2d8] sm:$0xff]
    %v861 = vld [vmem:[#allocation11 + $0x2e0] sm:$0xff]
    %v862 = vld [vmem:[#allocation11 + $0x2e8] sm:$0xff]
    %v863 = vld [vmem:[#allocation11 + $0x2f0] sm:$0xff]
    %v864 = vld [vmem:[#allocation11 + $0x2f8] sm:$0xff]
    %v865 = vld [vmem:[#allocation11 + $0x300] sm:$0xff]
    %v866 = vld [vmem:[#allocation11 + $0x308] sm:$0xff]
    %v867 = vld [vmem:[#allocation11 + $0x310] sm:$0xff]
    %v868 = vld [vmem:[#allocation11 + $0x318] sm:$0xff]
    %v869 = vld [vmem:[#allocation11 + $0x320] sm:$0xff]
    %v870 = vld [vmem:[#allocation11 + $0x328] sm:$0xff]
    %v871 = vld [vmem:[#allocation11 + $0x330] sm:$0xff]
    %v872 = vld [vmem:[#allocation11 + $0x338] sm:$0xff]
    %v873 = vld [vmem:[#allocation11 + $0x340] sm:$0xff]
    %v874 = vld [vmem:[#allocation11 + $0x348] sm:$0xff]
    %v875 = vld [vmem:[#allocation11 + $0x350] sm:$0xff]
    %v876 = vld [vmem:[#allocation11 + $0x358] sm:$0xff]
    %v877 = vld [vmem:[#allocation11 + $0x360] sm:$0xff]
    %v878 = vld [vmem:[#allocation11 + $0x368] sm:$0xff]
    %v879 = vld [vmem:[#allocation11 + $0x370] sm:$0xff]
    %v880 = vld [vmem:[#allocation11 + $0x378] sm:$0xff]
    %v881 = vld [vmem:[#allocation11 + $0x380] sm:$0xff]
    %v882 = vld [vmem:[#allocation11 + $0x388] sm:$0xff]
    %v883 = vld [vmem:[#allocation11 + $0x390] sm:$0xff]
    %v884 = vld [vmem:[#allocation11 + $0x398] sm:$0xff]
    %v885 = vld [vmem:[#allocation11 + $0x3a0] sm:$0xff]
    %v886 = vld [vmem:[#allocation11 + $0x3a8] sm:$0xff]
    %v887 = vld [vmem:[#allocation11 + $0x3b0] sm:$0xff]
    %v888 = vld [vmem:[#allocation11 + $0x3b8] sm:$0xff]
    %v889 = vld [vmem:[#allocation11 + $0x3c0] sm:$0xff]
    %v890 = vld [vmem:[#allocation11 + $0x3c8] sm:$0xff]
    %v891 = vld [vmem:[#allocation11 + $0x3d0] sm:$0xff]
    %v892 = vld [vmem:[#allocation11 + $0x3d8] sm:$0xff]
    %v893 = vld [vmem:[#allocation11 + $0x3e0] sm:$0xff]
    %v894 = vld [vmem:[#allocation11 + $0x3e8] sm:$0xff]
    %v895 = vld [vmem:[#allocation11 + $0x3f0] sm:$0xff]
    %v896 = vld [vmem:[#allocation11 + $0x3f8] sm:$0xff]
    %v897 = vld [vmem:[%s6] sm:$0xf]
    %v899 = vlaneseq
    %v900 = vshrl.u32 %v899, 7
    %v901 = vsub.s32 0, %v900
    %v902 = vrot.slane %v897, %v901
    %v903 = vlaneseq
    %v904 = vshrl.u32 %v903, 7
    %v905 = vsub.s32 1, %v904
    %v906 = vrot.slane %v897, %v905
    %v907 = vlaneseq
    %v908 = vshrl.u32 %v907, 7
    %v909 = vsub.s32 2, %v908
    %v910 = vrot.slane %v897, %v909
    %v911 = vlaneseq
    %v912 = vshrl.u32 %v911, 7
    %v913 = vsub.s32 3, %v912
    %v914 = vrot.slane %v897, %v913
    %v1047 = vunpack.c.l.b16 %v769
    %v1048 = vunpack.c.h.b16 %v769
    %v1049 = vunpack.c.l.b16 %v770
    %v1050 = vunpack.c.h.b16 %v770
    %v1051 = vunpack.c.l.b16 %v771
    %v1052 = vunpack.c.h.b16 %v771
    %v1053 = vunpack.c.l.b16 %v772
    %v1054 = vunpack.c.h.b16 %v772
    %v1055 = vunpack.c.l.b16 %v773
    %v1056 = vunpack.c.h.b16 %v773
    %v1057 = vunpack.c.l.b16 %v774
    %v1058 = vunpack.c.h.b16 %v774
    %v1059 = vunpack.c.l.b16 %v775
    %v1060 = vunpack.c.h.b16 %v775
    %v1061 = vunpack.c.l.b16 %v776
    %v1062 = vunpack.c.h.b16 %v776
    %v1063 = vunpack.c.l.b16 %v777
    %v1064 = vunpack.c.h.b16 %v777
    %v1065 = vunpack.c.l.b16 %v778
    %v1066 = vunpack.c.h.b16 %v778
    %v1067 = vunpack.c.l.b16 %v779
    %v1068 = vunpack.c.h.b16 %v779
    %v1069 = vunpack.c.l.b16 %v780
    %v1070 = vunpack.c.h.b16 %v780
    %v1071 = vunpack.c.l.b16 %v781
    %v1072 = vunpack.c.h.b16 %v781
    %v1073 = vunpack.c.l.b16 %v782
    %v1074 = vunpack.c.h.b16 %v782
    %v1075 = vunpack.c.l.b16 %v783
    %v1076 = vunpack.c.h.b16 %v783
    %v1077 = vunpack.c.l.b16 %v784
    %v1078 = vunpack.c.h.b16 %v784
    %v1079 = vunpack.c.l.b16 %v785
    %v1080 = vunpack.c.h.b16 %v785
    %v1081 = vunpack.c.l.b16 %v786
    %v1082 = vunpack.c.h.b16 %v786
    %v1083 = vunpack.c.l.b16 %v787
    %v1084 = vunpack.c.h.b16 %v787
    %v1085 = vunpack.c.l.b16 %v788
    %v1086 = vunpack.c.h.b16 %v788
    %v1087 = vunpack.c.l.b16 %v789
    %v1088 = vunpack.c.h.b16 %v789
    %v1089 = vunpack.c.l.b16 %v790
    %v1090 = vunpack.c.h.b16 %v790
    %v1091 = vunpack.c.l.b16 %v791
    %v1092 = vunpack.c.h.b16 %v791
    %v1093 = vunpack.c.l.b16 %v792
    %v1094 = vunpack.c.h.b16 %v792
    %v1095 = vunpack.c.l.b16 %v793
    %v1096 = vunpack.c.h.b16 %v793
    %v1097 = vunpack.c.l.b16 %v794
    %v1098 = vunpack.c.h.b16 %v794
    %v1099 = vunpack.c.l.b16 %v795
    %v1100 = vunpack.c.h.b16 %v795
    %v1101 = vunpack.c.l.b16 %v796
    %v1102 = vunpack.c.h.b16 %v796
    %v1103 = vunpack.c.l.b16 %v797
    %v1104 = vunpack.c.h.b16 %v797
    %v1105 = vunpack.c.l.b16 %v798
    %v1106 = vunpack.c.h.b16 %v798
    %v1107 = vunpack.c.l.b16 %v799
    %v1108 = vunpack.c.h.b16 %v799
    %v1109 = vunpack.c.l.b16 %v800
    %v1110 = vunpack.c.h.b16 %v800
    %v1111 = vunpack.c.l.b16 %v801
    %v1112 = vunpack.c.h.b16 %v801
    %v1113 = vunpack.c.l.b16 %v802
    %v1114 = vunpack.c.h.b16 %v802
    %v1115 = vunpack.c.l.b16 %v803
    %v1116 = vunpack.c.h.b16 %v803
    %v1117 = vunpack.c.l.b16 %v804
    %v1118 = vunpack.c.h.b16 %v804
    %v1119 = vunpack.c.l.b16 %v805
    %v1120 = vunpack.c.h.b16 %v805
    %v1121 = vunpack.c.l.b16 %v806
    %v1122 = vunpack.c.h.b16 %v806
    %v1123 = vunpack.c.l.b16 %v807
    %v1124 = vunpack.c.h.b16 %v807
    %v1125 = vunpack.c.l.b16 %v808
    %v1126 = vunpack.c.h.b16 %v808
    %v1127 = vunpack.c.l.b16 %v809
    %v1128 = vunpack.c.h.b16 %v809
    %v1129 = vunpack.c.l.b16 %v810
    %v1130 = vunpack.c.h.b16 %v810
    %v1131 = vunpack.c.l.b16 %v811
    %v1132 = vunpack.c.h.b16 %v811
    %v1133 = vunpack.c.l.b16 %v812
    %v1134 = vunpack.c.h.b16 %v812
    %v1135 = vunpack.c.l.b16 %v813
    %v1136 = vunpack.c.h.b16 %v813
    %v1137 = vunpack.c.l.b16 %v814
    %v1138 = vunpack.c.h.b16 %v814
    %v1139 = vunpack.c.l.b16 %v815
    %v1140 = vunpack.c.h.b16 %v815
    %v1141 = vunpack.c.l.b16 %v816
    %v1142 = vunpack.c.h.b16 %v816
    %v1143 = vunpack.c.l.b16 %v817
    %v1144 = vunpack.c.h.b16 %v817
    %v1145 = vunpack.c.l.b16 %v818
    %v1146 = vunpack.c.h.b16 %v818
    %v1147 = vunpack.c.l.b16 %v819
    %v1148 = vunpack.c.h.b16 %v819
    %v1149 = vunpack.c.l.b16 %v820
    %v1150 = vunpack.c.h.b16 %v820
    %v1151 = vunpack.c.l.b16 %v821
    %v1152 = vunpack.c.h.b16 %v821
    %v1153 = vunpack.c.l.b16 %v822
    %v1154 = vunpack.c.h.b16 %v822
    %v1155 = vunpack.c.l.b16 %v823
    %v1156 = vunpack.c.h.b16 %v823
    %v1157 = vunpack.c.l.b16 %v824
    %v1158 = vunpack.c.h.b16 %v824
    %v1159 = vunpack.c.l.b16 %v825
    %v1160 = vunpack.c.h.b16 %v825
    %v1161 = vunpack.c.l.b16 %v826
    %v1162 = vunpack.c.h.b16 %v826
    %v1163 = vunpack.c.l.b16 %v827
    %v1164 = vunpack.c.h.b16 %v827
    %v1165 = vunpack.c.l.b16 %v828
    %v1166 = vunpack.c.h.b16 %v828
    %v1167 = vunpack.c.l.b16 %v829
    %v1168 = vunpack.c.h.b16 %v829
    %v1169 = vunpack.c.l.b16 %v830
    %v1170 = vunpack.c.h.b16 %v830
    %v1171 = vunpack.c.l.b16 %v831
    %v1172 = vunpack.c.h.b16 %v831
    %v1173 = vunpack.c.l.b16 %v832
    %v1174 = vunpack.c.h.b16 %v832
    %v1175 = vunpack.c.l.b16 %v833
    %v1176 = vunpack.c.h.b16 %v833
    %v1177 = vunpack.c.l.b16 %v834
    %v1178 = vunpack.c.h.b16 %v834
    %v1179 = vunpack.c.l.b16 %v835
    %v1180 = vunpack.c.h.b16 %v835
    %v1181 = vunpack.c.l.b16 %v836
    %v1182 = vunpack.c.h.b16 %v836
    %v1183 = vunpack.c.l.b16 %v837
    %v1184 = vunpack.c.h.b16 %v837
    %v1185 = vunpack.c.l.b16 %v838
    %v1186 = vunpack.c.h.b16 %v838
    %v1187 = vunpack.c.l.b16 %v839
    %v1188 = vunpack.c.h.b16 %v839
    %v1189 = vunpack.c.l.b16 %v840
    %v1190 = vunpack.c.h.b16 %v840
    %v1191 = vunpack.c.l.b16 %v841
    %v1192 = vunpack.c.h.b16 %v841
    %v1193 = vunpack.c.l.b16 %v842
    %v1194 = vunpack.c.h.b16 %v842
    %v1195 = vunpack.c.l.b16 %v843
    %v1196 = vunpack.c.h.b16 %v843
    %v1197 = vunpack.c.l.b16 %v844
    %v1198 = vunpack.c.h.b16 %v844
    %v1199 = vunpack.c.l.b16 %v845
    %v1200 = vunpack.c.h.b16 %v845
    %v1201 = vunpack.c.l.b16 %v846
    %v1202 = vunpack.c.h.b16 %v846
    %v1203 = vunpack.c.l.b16 %v847
    %v1204 = vunpack.c.h.b16 %v847
    %v1205 = vunpack.c.l.b16 %v848
    %v1206 = vunpack.c.h.b16 %v848
    %v1207 = vunpack.c.l.b16 %v849
    %v1208 = vunpack.c.h.b16 %v849
    %v1209 = vunpack.c.l.b16 %v850
    %v1210 = vunpack.c.h.b16 %v850
    %v1211 = vunpack.c.l.b16 %v851
    %v1212 = vunpack.c.h.b16 %v851
    %v1213 = vunpack.c.l.b16 %v852
    %v1214 = vunpack.c.h.b16 %v852
    %v1215 = vunpack.c.l.b16 %v853
    %v1216 = vunpack.c.h.b16 %v853
    %v1217 = vunpack.c.l.b16 %v854
    %v1218 = vunpack.c.h.b16 %v854
    %v1219 = vunpack.c.l.b16 %v855
    %v1220 = vunpack.c.h.b16 %v855
    %v1221 = vunpack.c.l.b16 %v856
    %v1222 = vunpack.c.h.b16 %v856
    %v1223 = vunpack.c.l.b16 %v857
    %v1224 = vunpack.c.h.b16 %v857
    %v1225 = vunpack.c.l.b16 %v858
    %v1226 = vunpack.c.h.b16 %v858
    %v1227 = vunpack.c.l.b16 %v859
    %v1228 = vunpack.c.h.b16 %v859
    %v1229 = vunpack.c.l.b16 %v860
    %v1230 = vunpack.c.h.b16 %v860
    %v1231 = vunpack.c.l.b16 %v861
    %v1232 = vunpack.c.h.b16 %v861
    %v1233 = vunpack.c.l.b16 %v862
    %v1234 = vunpack.c.h.b16 %v862
    %v1235 = vunpack.c.l.b16 %v863
    %v1236 = vunpack.c.h.b16 %v863
    %v1237 = vunpack.c.l.b16 %v864
    %v1238 = vunpack.c.h.b16 %v864
    %v1239 = vunpack.c.l.b16 %v865
    %v1240 = vunpack.c.h.b16 %v865
    %v1241 = vunpack.c.l.b16 %v866
    %v1242 = vunpack.c.h.b16 %v866
    %v1243 = vunpack.c.l.b16 %v867
    %v1244 = vunpack.c.h.b16 %v867
    %v1245 = vunpack.c.l.b16 %v868
    %v1246 = vunpack.c.h.b16 %v868
    %v1247 = vunpack.c.l.b16 %v869
    %v1248 = vunpack.c.h.b16 %v869
    %v1249 = vunpack.c.l.b16 %v870
    %v1250 = vunpack.c.h.b16 %v870
    %v1251 = vunpack.c.l.b16 %v871
    %v1252 = vunpack.c.h.b16 %v871
    %v1253 = vunpack.c.l.b16 %v872
    %v1254 = vunpack.c.h.b16 %v872
    %v1255 = vunpack.c.l.b16 %v873
    %v1256 = vunpack.c.h.b16 %v873
    %v1257 = vunpack.c.l.b16 %v874
    %v1258 = vunpack.c.h.b16 %v874
    %v1259 = vunpack.c.l.b16 %v875
    %v1260 = vunpack.c.h.b16 %v875
    %v1261 = vunpack.c.l.b16 %v876
    %v1262 = vunpack.c.h.b16 %v876
    %v1263 = vunpack.c.l.b16 %v877
    %v1264 = vunpack.c.h.b16 %v877
    %v1265 = vunpack.c.l.b16 %v878
    %v1266 = vunpack.c.h.b16 %v878
    %v1267 = vunpack.c.l.b16 %v879
    %v1268 = vunpack.c.h.b16 %v879
    %v1269 = vunpack.c.l.b16 %v880
    %v1270 = vunpack.c.h.b16 %v880
    %v1271 = vunpack.c.l.b16 %v881
    %v1272 = vunpack.c.h.b16 %v881
    %v1273 = vunpack.c.l.b16 %v882
    %v1274 = vunpack.c.h.b16 %v882
    %v1275 = vunpack.c.l.b16 %v883
    %v1276 = vunpack.c.h.b16 %v883
    %v1277 = vunpack.c.l.b16 %v884
    %v1278 = vunpack.c.h.b16 %v884
    %v1279 = vunpack.c.l.b16 %v885
    %v1280 = vunpack.c.h.b16 %v885
    %v1281 = vunpack.c.l.b16 %v886
    %v1282 = vunpack.c.h.b16 %v886
    %v1283 = vunpack.c.l.b16 %v887
    %v1284 = vunpack.c.h.b16 %v887
    %v1285 = vunpack.c.l.b16 %v888
    %v1286 = vunpack.c.h.b16 %v888
    %v1287 = vunpack.c.l.b16 %v889
    %v1288 = vunpack.c.h.b16 %v889
    %v1289 = vunpack.c.l.b16 %v890
    %v1290 = vunpack.c.h.b16 %v890
    %v1291 = vunpack.c.l.b16 %v891
    %v1292 = vunpack.c.h.b16 %v891
    %v1293 = vunpack.c.l.b16 %v892
    %v1294 = vunpack.c.h.b16 %v892
    %v1295 = vunpack.c.l.b16 %v893
    %v1296 = vunpack.c.h.b16 %v893
    %v1297 = vunpack.c.l.b16 %v894
    %v1298 = vunpack.c.h.b16 %v894
    %v1299 = vunpack.c.l.b16 %v895
    %v1300 = vunpack.c.h.b16 %v895
    %v1301 = vunpack.c.l.b16 %v896
    %v1302 = vunpack.c.h.b16 %v896
    %v1303 = vpack.c.b16 %v1051, %v1047
    %v1304 = vpack.c.b16 %v1052, %v1048
    %v1305 = vpack.c.b16 %v1053, %v1049
    %v1306 = vpack.c.b16 %v1054, %v1050
    %v1307 = vpack.c.b16 %v1059, %v1055
    %v1308 = vpack.c.b16 %v1060, %v1056
    %v1309 = vpack.c.b16 %v1061, %v1057
    %v1310 = vpack.c.b16 %v1062, %v1058
    %v1311 = vpack.c.b16 %v1067, %v1063
    %v1312 = vpack.c.b16 %v1068, %v1064
    %v1313 = vpack.c.b16 %v1069, %v1065
    %v1314 = vpack.c.b16 %v1070, %v1066
    %v1315 = vpack.c.b16 %v1075, %v1071
    %v1316 = vpack.c.b16 %v1076, %v1072
    %v1317 = vpack.c.b16 %v1077, %v1073
    %v1318 = vpack.c.b16 %v1078, %v1074
    %v1319 = vpack.c.b16 %v1083, %v1079
    %v1320 = vpack.c.b16 %v1084, %v1080
    %v1321 = vpack.c.b16 %v1085, %v1081
    %v1322 = vpack.c.b16 %v1086, %v1082
    %v1323 = vpack.c.b16 %v1091, %v1087
    %v1324 = vpack.c.b16 %v1092, %v1088
    %v1325 = vpack.c.b16 %v1093, %v1089
    %v1326 = vpack.c.b16 %v1094, %v1090
    %v1327 = vpack.c.b16 %v1099, %v1095
    %v1328 = vpack.c.b16 %v1100, %v1096
    %v1329 = vpack.c.b16 %v1101, %v1097
    %v1330 = vpack.c.b16 %v1102, %v1098
    %v1331 = vpack.c.b16 %v1107, %v1103
    %v1332 = vpack.c.b16 %v1108, %v1104
    %v1333 = vpack.c.b16 %v1109, %v1105
    %v1334 = vpack.c.b16 %v1110, %v1106
    %v1335 = vpack.c.b16 %v1115, %v1111
    %v1336 = vpack.c.b16 %v1116, %v1112
    %v1337 = vpack.c.b16 %v1117, %v1113
    %v1338 = vpack.c.b16 %v1118, %v1114
    %v1339 = vpack.c.b16 %v1123, %v1119
    %v1340 = vpack.c.b16 %v1124, %v1120
    %v1341 = vpack.c.b16 %v1125, %v1121
    %v1342 = vpack.c.b16 %v1126, %v1122
    %v1343 = vpack.c.b16 %v1131, %v1127
    %v1344 = vpack.c.b16 %v1132, %v1128
    %v1345 = vpack.c.b16 %v1133, %v1129
    %v1346 = vpack.c.b16 %v1134, %v1130
    %v1347 = vpack.c.b16 %v1139, %v1135
    %v1348 = vpack.c.b16 %v1140, %v1136
    %v1349 = vpack.c.b16 %v1141, %v1137
    %v1350 = vpack.c.b16 %v1142, %v1138
    %v1351 = vpack.c.b16 %v1147, %v1143
    %v1352 = vpack.c.b16 %v1148, %v1144
    %v1353 = vpack.c.b16 %v1149, %v1145
    %v1354 = vpack.c.b16 %v1150, %v1146
    %v1355 = vpack.c.b16 %v1155, %v1151
    %v1356 = vpack.c.b16 %v1156, %v1152
    %v1357 = vpack.c.b16 %v1157, %v1153
    %v1358 = vpack.c.b16 %v1158, %v1154
    %v1359 = vpack.c.b16 %v1163, %v1159
    %v1360 = vpack.c.b16 %v1164, %v1160
    %v1361 = vpack.c.b16 %v1165, %v1161
    %v1362 = vpack.c.b16 %v1166, %v1162
    %v1363 = vpack.c.b16 %v1171, %v1167
    %v1364 = vpack.c.b16 %v1172, %v1168
    %v1365 = vpack.c.b16 %v1173, %v1169
    %v1366 = vpack.c.b16 %v1174, %v1170
    %v1367 = vpack.c.b16 %v1179, %v1175
    %v1368 = vpack.c.b16 %v1180, %v1176
    %v1369 = vpack.c.b16 %v1181, %v1177
    %v1370 = vpack.c.b16 %v1182, %v1178
    %v1371 = vpack.c.b16 %v1187, %v1183
    %v1372 = vpack.c.b16 %v1188, %v1184
    %v1373 = vpack.c.b16 %v1189, %v1185
    %v1374 = vpack.c.b16 %v1190, %v1186
    %v1375 = vpack.c.b16 %v1195, %v1191
    %v1376 = vpack.c.b16 %v1196, %v1192
    %v1377 = vpack.c.b16 %v1197, %v1193
    %v1378 = vpack.c.b16 %v1198, %v1194
    %v1379 = vpack.c.b16 %v1203, %v1199
    %v1380 = vpack.c.b16 %v1204, %v1200
    %v1381 = vpack.c.b16 %v1205, %v1201
    %v1382 = vpack.c.b16 %v1206, %v1202
    %v1383 = vpack.c.b16 %v1211, %v1207
    %v1384 = vpack.c.b16 %v1212, %v1208
    %v1385 = vpack.c.b16 %v1213, %v1209
    %v1386 = vpack.c.b16 %v1214, %v1210
    %v1387 = vpack.c.b16 %v1219, %v1215
    %v1388 = vpack.c.b16 %v1220, %v1216
    %v1389 = vpack.c.b16 %v1221, %v1217
    %v1390 = vpack.c.b16 %v1222, %v1218
    %v1391 = vpack.c.b16 %v1227, %v1223
    %v1392 = vpack.c.b16 %v1228, %v1224
    %v1393 = vpack.c.b16 %v1229, %v1225
    %v1394 = vpack.c.b16 %v1230, %v1226
    %v1395 = vpack.c.b16 %v1235, %v1231
    %v1396 = vpack.c.b16 %v1236, %v1232
    %v1397 = vpack.c.b16 %v1237, %v1233
    %v1398 = vpack.c.b16 %v1238, %v1234
    %v1399 = vpack.c.b16 %v1243, %v1239
    %v1400 = vpack.c.b16 %v1244, %v1240
    %v1401 = vpack.c.b16 %v1245, %v1241
    %v1402 = vpack.c.b16 %v1246, %v1242
    %v1403 = vpack.c.b16 %v1251, %v1247
    %v1404 = vpack.c.b16 %v1252, %v1248
    %v1405 = vpack.c.b16 %v1253, %v1249
    %v1406 = vpack.c.b16 %v1254, %v1250
    %v1407 = vpack.c.b16 %v1259, %v1255
    %v1408 = vpack.c.b16 %v1260, %v1256
    %v1409 = vpack.c.b16 %v1261, %v1257
    %v1410 = vpack.c.b16 %v1262, %v1258
    %v1411 = vpack.c.b16 %v1267, %v1263
    %v1412 = vpack.c.b16 %v1268, %v1264
    %v1413 = vpack.c.b16 %v1269, %v1265
    %v1414 = vpack.c.b16 %v1270, %v1266
    %v1415 = vpack.c.b16 %v1275, %v1271
    %v1416 = vpack.c.b16 %v1276, %v1272
    %v1417 = vpack.c.b16 %v1277, %v1273
    %v1418 = vpack.c.b16 %v1278, %v1274
    %v1419 = vpack.c.b16 %v1283, %v1279
    %v1420 = vpack.c.b16 %v1284, %v1280
    %v1421 = vpack.c.b16 %v1285, %v1281
    %v1422 = vpack.c.b16 %v1286, %v1282
    %v1423 = vpack.c.b16 %v1291, %v1287
    %v1424 = vpack.c.b16 %v1292, %v1288
    %v1425 = vpack.c.b16 %v1293, %v1289
    %v1426 = vpack.c.b16 %v1294, %v1290
    %v1427 = vpack.c.b16 %v1299, %v1295
    %v1428 = vpack.c.b16 %v1300, %v1296
    %v1429 = vpack.c.b16 %v1301, %v1297
    %v1430 = vpack.c.b16 %v1302, %v1298
    %1559 = vmatprep.subr.bf16.mxu0 %v1332
    %1560 = vmatpush1.bf16.msra.mxu0 %v1331
    %1561 = vmatprep.subr.bf16.mxu0 %v1328
    %1562 = vmatpush1.bf16.msra.mxu0 %v1327
    %1563 = vmatprep.subr.bf16.mxu0 %v1324
    %1564 = vmatpush1.bf16.msra.mxu0 %v1323
    %1565 = vmatprep.subr.bf16.mxu0 %v1320
    %1566 = vmatpush1.bf16.msra.mxu0 %v1319
    %1567 = vmatprep.subr.bf16.mxu0 %v1316
    %1568 = vmatpush1.bf16.msra.mxu0 %v1315
    %1569 = vmatprep.subr.bf16.mxu0 %v1312
    %1570 = vmatpush1.bf16.msra.mxu0 %v1311
    %1571 = vmatprep.subr.bf16.mxu0 %v1308
    %1572 = vmatpush1.bf16.msra.mxu0 %v1307
    %1573 = vmatprep.subr.bf16.mxu0 %v1304
    %1574 = vmatpush1.bf16.msra.mxu0 %v1303
    %1575 = vmatprep.subr.bf16.mxu0 %v1364
    %1576 = vmatpush2.bf16.msra.mxu0 %v1363
    %1577 = vmatprep.subr.bf16.mxu0 %v1360
    %1578 = vmatpush2.bf16.msra.mxu0 %v1359
    %1579 = vmatprep.subr.bf16.mxu0 %v1356
    %1580 = vmatpush2.bf16.msra.mxu0 %v1355
    %1581 = vmatprep.subr.bf16.mxu0 %v1352
    %1582 = vmatpush2.bf16.msra.mxu0 %v1351
    %1583 = vmatprep.subr.bf16.mxu0 %v1348
    %1584 = vmatpush2.bf16.msra.mxu0 %v1347
    %1585 = vmatprep.subr.bf16.mxu0 %v1344
    %1586 = vmatpush2.bf16.msra.mxu0 %v1343
    %1587 = vmatprep.subr.bf16.mxu0 %v1340
    %1588 = vmatpush2.bf16.msra.mxu0 %v1339
    %1589 = vmatprep.subr.bf16.mxu0 %v1336
    %1590 = vmatpush2.bf16.msra.mxu0 %v1335
    %1591 = vmatprep.mubr.bf16.mxu0 %v766
    %1592 = vmatmul.mubr.bf16.gmra.mxu0 %v765
    %v1593 = vpop.f32.mrf.mxu0
    %v1594 = vadd.f32 %v902, %v1593
    %v1595 = vpop.f32.mrf.mxu0
    %v1596 = vadd.f32 %v906, %v1595
    %v1597 = vpop.f32.mrf.mxu0
    %v1598 = vpop.f32.mrf.mxu0
    %1599 = vdwg.mxu0
    %1600 = vmatprep.subr.bf16.mxu0 %v1396
    %1601 = vmatpush1.bf16.msra.mxu0 %v1395
    %1602 = vmatprep.subr.bf16.mxu0 %v1392
    %1603 = vmatpush1.bf16.msra.mxu0 %v1391
    %1604 = vmatprep.subr.bf16.mxu0 %v1388
    %1605 = vmatpush1.bf16.msra.mxu0 %v1387
    %1606 = vmatprep.subr.bf16.mxu0 %v1384
    %1607 = vmatpush1.bf16.msra.mxu0 %v1383
    %1608 = vmatprep.subr.bf16.mxu0 %v1380
    %1609 = vmatpush1.bf16.msra.mxu0 %v1379
    %1610 = vmatprep.subr.bf16.mxu0 %v1376
    %1611 = vmatpush1.bf16.msra.mxu0 %v1375
    %1612 = vmatprep.subr.bf16.mxu0 %v1372
    %1613 = vmatpush1.bf16.msra.mxu0 %v1371
    %1614 = vmatprep.subr.bf16.mxu0 %v1368
    %1615 = vmatpush1.bf16.msra.mxu0 %v1367
    %1616 = vmatprep.subr.bf16.mxu0 %v1428
    %1617 = vmatpush2.bf16.msra.mxu0 %v1427
    %1618 = vmatprep.subr.bf16.mxu0 %v1424
    %1619 = vmatpush2.bf16.msra.mxu0 %v1423
    %1620 = vmatprep.subr.bf16.mxu0 %v1420
    %1621 = vmatpush2.bf16.msra.mxu0 %v1419
    %1622 = vmatprep.subr.bf16.mxu0 %v1416
    %1623 = vmatpush2.bf16.msra.mxu0 %v1415
    %1624 = vmatprep.subr.bf16.mxu0 %v1412
    %1625 = vmatpush2.bf16.msra.mxu0 %v1411
    %1626 = vmatprep.subr.bf16.mxu0 %v1408
    %1627 = vmatpush2.bf16.msra.mxu0 %v1407
    %1628 = vmatprep.subr.bf16.mxu0 %v1404
    %1629 = vmatpush2.bf16.msra.mxu0 %v1403
    %1630 = vmatprep.subr.bf16.mxu0 %v1400
    %1631 = vmatpush2.bf16.msra.mxu0 %v1399
    %1632 = vmatprep.mubr.bf16.mxu0 %v768
    %1633 = vmatmul.mubr.bf16.gmra.mxu0 %v767
    %v1634 = vpop.f32.mrf.mxu0
    %v1635 = vadd.f32 %v1594, %v1634
    %v1636 = vpop.f32.mrf.mxu0
    %v1637 = vadd.f32 %v1596, %v1636
    %v1638 = vpop.f32.mrf.mxu0
    %v1639 = vpop.f32.mrf.mxu0
    %1640 = vdwg.mxu0
    %1641 = vmatprep.subr.bf16.mxu0 %v1334
    %1642 = vmatpush1.bf16.msra.mxu0 %v1333
    %1643 = vmatprep.subr.bf16.mxu0 %v1330
    %1644 = vmatpush1.bf16.msra.mxu0 %v1329
    %1645 = vmatprep.subr.bf16.mxu0 %v1326
    %1646 = vmatpush1.bf16.msra.mxu0 %v1325
    %1647 = vmatprep.subr.bf16.mxu0 %v1322
    %1648 = vmatpush1.bf16.msra.mxu0 %v1321
    %1649 = vmatprep.subr.bf16.mxu0 %v1318
    %1650 = vmatpush1.bf16.msra.mxu0 %v1317
    %1651 = vmatprep.subr.bf16.mxu0 %v1314
    %1652 = vmatpush1.bf16.msra.mxu0 %v1313
    %1653 = vmatprep.subr.bf16.mxu0 %v1310
    %1654 = vmatpush1.bf16.msra.mxu0 %v1309
    %1655 = vmatprep.subr.bf16.mxu0 %v1306
    %1656 = vmatpush1.bf16.msra.mxu0 %v1305
    %1657 = vmatprep.subr.bf16.mxu0 %v1366
    %1658 = vmatpush2.bf16.msra.mxu0 %v1365
    %1659 = vmatprep.subr.bf16.mxu0 %v1362
    %1660 = vmatpush2.bf16.msra.mxu0 %v1361
    %1661 = vmatprep.subr.bf16.mxu0 %v1358
    %1662 = vmatpush2.bf16.msra.mxu0 %v1357
    %1663 = vmatprep.subr.bf16.mxu0 %v1354
    %1664 = vmatpush2.bf16.msra.mxu0 %v1353
    %1665 = vmatprep.subr.bf16.mxu0 %v1350
    %1666 = vmatpush2.bf16.msra.mxu0 %v1349
    %1667 = vmatprep.subr.bf16.mxu0 %v1346
    %1668 = vmatpush2.bf16.msra.mxu0 %v1345
    %1669 = vmatprep.subr.bf16.mxu0 %v1342
    %1670 = vmatpush2.bf16.msra.mxu0 %v1341
    %1671 = vmatprep.subr.bf16.mxu0 %v1338
    %1672 = vmatpush2.bf16.msra.mxu0 %v1337
    %1673 = vmatprep.mubr.bf16.mxu0 %v766
    %1674 = vmatmul.mubr.bf16.gmra.mxu0 %v765
    %v1675 = vpop.f32.mrf.mxu0
    %v1676 = vadd.f32 %v910, %v1675
    %v1677 = vpop.f32.mrf.mxu0
    %v1678 = vadd.f32 %v914, %v1677
    %v1679 = vpop.f32.mrf.mxu0
    %v1680 = vpop.f32.mrf.mxu0
    %1681 = vdwg.mxu0
    %1682 = vmatprep.subr.bf16.mxu0 %v1398
    %1683 = vmatpush1.bf16.msra.mxu0 %v1397
    %1684 = vmatprep.subr.bf16.mxu0 %v1394
    %1685 = vmatpush1.bf16.msra.mxu0 %v1393
    %1686 = vmatprep.subr.bf16.mxu0 %v1390
    %1687 = vmatpush1.bf16.msra.mxu0 %v1389
    %1688 = vmatprep.subr.bf16.mxu0 %v1386
    %1689 = vmatpush1.bf16.msra.mxu0 %v1385
    %1690 = vmatprep.subr.bf16.mxu0 %v1382
    %1691 = vmatpush1.bf16.msra.mxu0 %v1381
    %1692 = vmatprep.subr.bf16.mxu0 %v1378
    %1693 = vmatpush1.bf16.msra.mxu0 %v1377
    %1694 = vmatprep.subr.bf16.mxu0 %v1374
    %1695 = vmatpush1.bf16.msra.mxu0 %v1373
    %1696 = vmatprep.subr.bf16.mxu0 %v1370
    %1697 = vmatpush1.bf16.msra.mxu0 %v1369
    %1698 = vmatprep.subr.bf16.mxu0 %v1430
    %1699 = vmatpush2.bf16.msra.mxu0 %v1429
    %1700 = vmatprep.subr.bf16.mxu0 %v1426
    %1701 = vmatpush2.bf16.msra.mxu0 %v1425
    %1702 = vmatprep.subr.bf16.mxu0 %v1422
    %1703 = vmatpush2.bf16.msra.mxu0 %v1421
    %1704 = vmatprep.subr.bf16.mxu0 %v1418
    %1705 = vmatpush2.bf16.msra.mxu0 %v1417
    %1706 = vmatprep.subr.bf16.mxu0 %v1414
    %1707 = vmatpush2.bf16.msra.mxu0 %v1413
    %1708 = vmatprep.subr.bf16.mxu0 %v1410
    %1709 = vmatpush2.bf16.msra.mxu0 %v1409
    %1710 = vmatprep.subr.bf16.mxu0 %v1406
    %1711 = vmatpush2.bf16.msra.mxu0 %v1405
    %1712 = vmatprep.subr.bf16.mxu0 %v1402
    %1713 = vmatpush2.bf16.msra.mxu0 %v1401
    %1714 = vmatprep.mubr.bf16.mxu0 %v768
    %1715 = vmatmul.mubr.bf16.gmra.mxu0 %v767
    %v1716 = vpop.f32.mrf.mxu0
    %v1717 = vadd.f32 %v1676, %v1716
    %v1718 = vpop.f32.mrf.mxu0
    %v1719 = vadd.f32 %v1678, %v1718
    %v1720 = vpop.f32.mrf.mxu0
    %v1721 = vpop.f32.mrf.mxu0
    %1722 = vdwg.mxu0
    %v1723 = vpack.c.bf16 %v1635, %v1635
    %v1724 = vpack.c.bf16 %v1637, %v1637
    %v1725 = vpack.c.bf16 %v1717, %v1717
    %v1726 = vpack.c.bf16 %v1719, %v1719
    %v1727 = vmul.bf16 %v1723, 1045249613
    %v1728 = vmul.bf16 %v1724, 1045249613
    %v1729 = vmul.bf16 %v1725, 1045249613
    %v1730 = vmul.bf16 %v1726, 1045249613
    %v1731 = vmax.bf16 %v1723, %v1727
    %v1732 = vmax.bf16 %v1724, %v1728
    %v1733 = vmax.bf16 %v1725, %v1729
    %v1734 = vmax.bf16 %v1726, %v1730
    %v1735 = vld [vmem:[#allocation12] sm:$0xf]
    %v1736 = vld [vmem:[#allocation12 + $0x4] sm:$0xf]
    %v1737 = vld [vmem:[#allocation12 + $0x8] sm:$0xf]
    %v1738 = vld [vmem:[#allocation12 + $0xc] sm:$0xf]
    %v1739 = vld [vmem:[#allocation12 + $0x10] sm:$0xf]
    %v1740 = vld [vmem:[#allocation12 + $0x14] sm:$0xf]
    %v1741 = vld [vmem:[#allocation12 + $0x18] sm:$0xf]
    %v1742 = vld [vmem:[#allocation12 + $0x1c] sm:$0xf]
    %v1743 = vld [vmem:[#allocation12 + $0x20] sm:$0xf]
    %v1744 = vld [vmem:[#allocation12 + $0x24] sm:$0xf]
    %v1745 = vld [vmem:[#allocation12 + $0x28] sm:$0xf]
    %v1746 = vld [vmem:[#allocation12 + $0x2c] sm:$0xf]
    %v1747 = vld [vmem:[#allocation12 + $0x30] sm:$0xf]
    %v1748 = vld [vmem:[#allocation12 + $0x34] sm:$0xf]
    %v1749 = vld [vmem:[#allocation12 + $0x38] sm:$0xf]
    %v1750 = vld [vmem:[#allocation12 + $0x3c] sm:$0xf]
    %v1751 = vld [vmem:[#allocation12 + $0x40] sm:$0xf]
    %v1752 = vld [vmem:[#allocation12 + $0x44] sm:$0xf]
    %v1753 = vld [vmem:[#allocation12 + $0x48] sm:$0xf]
    %v1754 = vld [vmem:[#allocation12 + $0x4c] sm:$0xf]
    %v1755 = vld [vmem:[#allocation12 + $0x50] sm:$0xf]
    %v1756 = vld [vmem:[#allocation12 + $0x54] sm:$0xf]
    %v1757 = vld [vmem:[#allocation12 + $0x58] sm:$0xf]
    %v1758 = vld [vmem:[#allocation12 + $0x5c] sm:$0xf]
    %v1759 = vld [vmem:[#allocation12 + $0x60] sm:$0xf]
    %v1760 = vld [vmem:[#allocation12 + $0x64] sm:$0xf]
    %v1761 = vld [vmem:[#allocation12 + $0x68] sm:$0xf]
    %v1762 = vld [vmem:[#allocation12 + $0x6c] sm:$0xf]
    %v1763 = vld [vmem:[#allocation12 + $0x70] sm:$0xf]
    %v1764 = vld [vmem:[#allocation12 + $0x74] sm:$0xf]
    %v1765 = vld [vmem:[#allocation12 + $0x78] sm:$0xf]
    %v1766 = vld [vmem:[#allocation12 + $0x7c] sm:$0xf]
    %v1767 = vld [vmem:[#allocation12 + $0x80] sm:$0xf]
    %v1768 = vld [vmem:[#allocation12 + $0x84] sm:$0xf]
    %v1769 = vld [vmem:[#allocation12 + $0x88] sm:$0xf]
    %v1770 = vld [vmem:[#allocation12 + $0x8c] sm:$0xf]
    %v1771 = vld [vmem:[#allocation12 + $0x90] sm:$0xf]
    %v1772 = vld [vmem:[#allocation12 + $0x94] sm:$0xf]
    %v1773 = vld [vmem:[#allocation12 + $0x98] sm:$0xf]
    %v1774 = vld [vmem:[#allocation12 + $0x9c] sm:$0xf]
    %v1775 = vld [vmem:[#allocation12 + $0xa0] sm:$0xf]
    %v1776 = vld [vmem:[#allocation12 + $0xa4] sm:$0xf]
    %v1777 = vld [vmem:[#allocation12 + $0xa8] sm:$0xf]
    %v1778 = vld [vmem:[#allocation12 + $0xac] sm:$0xf]
    %v1779 = vld [vmem:[#allocation12 + $0xb0] sm:$0xf]
    %v1780 = vld [vmem:[#allocation12 + $0xb4] sm:$0xf]
    %v1781 = vld [vmem:[#allocation12 + $0xb8] sm:$0xf]
    %v1782 = vld [vmem:[#allocation12 + $0xbc] sm:$0xf]
    %v1783 = vld [vmem:[#allocation12 + $0xc0] sm:$0xf]
    %v1784 = vld [vmem:[#allocation12 + $0xc4] sm:$0xf]
    %v1785 = vld [vmem:[#allocation12 + $0xc8] sm:$0xf]
    %v1786 = vld [vmem:[#allocation12 + $0xcc] sm:$0xf]
    %v1787 = vld [vmem:[#allocation12 + $0xd0] sm:$0xf]
    %v1788 = vld [vmem:[#allocation12 + $0xd4] sm:$0xf]
    %v1789 = vld [vmem:[#allocation12 + $0xd8] sm:$0xf]
    %v1790 = vld [vmem:[#allocation12 + $0xdc] sm:$0xf]
    %v1791 = vld [vmem:[#allocation12 + $0xe0] sm:$0xf]
    %v1792 = vld [vmem:[#allocation12 + $0xe4] sm:$0xf]
    %v1793 = vld [vmem:[#allocation12 + $0xe8] sm:$0xf]
    %v1794 = vld [vmem:[#allocation12 + $0xec] sm:$0xf]
    %v1795 = vld [vmem:[#allocation12 + $0xf0] sm:$0xf]
    %v1796 = vld [vmem:[#allocation12 + $0xf4] sm:$0xf]
    %v1797 = vld [vmem:[#allocation12 + $0xf8] sm:$0xf]
    %v1798 = vld [vmem:[#allocation12 + $0xfc] sm:$0xf]
    %v1799 = vld [vmem:[#allocation2] sm:$0x1]
    %v1801 = vlaneseq
    %v1802 = vshrl.u32 %v1801, 7
    %v1803 = vsub.s32 0, %v1802
    %v1804 = vrot.slane %v1799, %v1803
    %1805 = vset.pattern.permute.xlu0 0
    %1806 = vperm.xlu0 %1805, %v1804
    %v1807 = vpop.permute.xlu0 %1806
    %v1873 = vunpack.c.l.b16 %v1735
    %v1874 = vunpack.c.l.b16 %v1736
    %v1875 = vunpack.c.l.b16 %v1737
    %v1876 = vunpack.c.l.b16 %v1738
    %v1877 = vunpack.c.l.b16 %v1739
    %v1878 = vunpack.c.l.b16 %v1740
    %v1879 = vunpack.c.l.b16 %v1741
    %v1880 = vunpack.c.l.b16 %v1742
    %v1881 = vunpack.c.l.b16 %v1743
    %v1882 = vunpack.c.l.b16 %v1744
    %v1883 = vunpack.c.l.b16 %v1745
    %v1884 = vunpack.c.l.b16 %v1746
    %v1885 = vunpack.c.l.b16 %v1747
    %v1886 = vunpack.c.l.b16 %v1748
    %v1887 = vunpack.c.l.b16 %v1749
    %v1888 = vunpack.c.l.b16 %v1750
    %v1889 = vunpack.c.l.b16 %v1751
    %v1890 = vunpack.c.l.b16 %v1752
    %v1891 = vunpack.c.l.b16 %v1753
    %v1892 = vunpack.c.l.b16 %v1754
    %v1893 = vunpack.c.l.b16 %v1755
    %v1894 = vunpack.c.l.b16 %v1756
    %v1895 = vunpack.c.l.b16 %v1757
    %v1896 = vunpack.c.l.b16 %v1758
    %v1897 = vunpack.c.l.b16 %v1759
    %v1898 = vunpack.c.l.b16 %v1760
    %v1899 = vunpack.c.l.b16 %v1761
    %v1900 = vunpack.c.l.b16 %v1762
    %v1901 = vunpack.c.l.b16 %v1763
    %v1902 = vunpack.c.l.b16 %v1764
    %v1903 = vunpack.c.l.b16 %v1765
    %v1904 = vunpack.c.l.b16 %v1766
    %v1905 = vunpack.c.l.b16 %v1767
    %v1906 = vunpack.c.l.b16 %v1768
    %v1907 = vunpack.c.l.b16 %v1769
    %v1908 = vunpack.c.l.b16 %v1770
    %v1909 = vunpack.c.l.b16 %v1771
    %v1910 = vunpack.c.l.b16 %v1772
    %v1911 = vunpack.c.l.b16 %v1773
    %v1912 = vunpack.c.l.b16 %v1774
    %v1913 = vunpack.c.l.b16 %v1775
    %v1914 = vunpack.c.l.b16 %v1776
    %v1915 = vunpack.c.l.b16 %v1777
    %v1916 = vunpack.c.l.b16 %v1778
    %v1917 = vunpack.c.l.b16 %v1779
    %v1918 = vunpack.c.l.b16 %v1780
    %v1919 = vunpack.c.l.b16 %v1781
    %v1920 = vunpack.c.l.b16 %v1782
    %v1921 = vunpack.c.l.b16 %v1783
    %v1922 = vunpack.c.l.b16 %v1784
    %v1923 = vunpack.c.l.b16 %v1785
    %v1924 = vunpack.c.l.b16 %v1786
    %v1925 = vunpack.c.l.b16 %v1787
    %v1926 = vunpack.c.l.b16 %v1788
    %v1927 = vunpack.c.l.b16 %v1789
    %v1928 = vunpack.c.l.b16 %v1790
    %v1929 = vunpack.c.l.b16 %v1791
    %v1930 = vunpack.c.l.b16 %v1792
    %v1931 = vunpack.c.l.b16 %v1793
    %v1932 = vunpack.c.l.b16 %v1794
    %v1933 = vunpack.c.l.b16 %v1795
    %v1934 = vunpack.c.l.b16 %v1796
    %v1935 = vunpack.c.l.b16 %v1797
    %v1936 = vunpack.c.l.b16 %v1798
    %v1937 = vpack.c.b16 %v1874, %v1873
    %v1938 = vpack.c.b16 %v1876, %v1875
    %v1939 = vpack.c.b16 %v1878, %v1877
    %v1940 = vpack.c.b16 %v1880, %v1879
    %v1941 = vpack.c.b16 %v1882, %v1881
    %v1942 = vpack.c.b16 %v1884, %v1883
    %v1943 = vpack.c.b16 %v1886, %v1885
    %v1944 = vpack.c.b16 %v1888, %v1887
    %v1945 = vpack.c.b16 %v1890, %v1889
    %v1946 = vpack.c.b16 %v1892, %v1891
    %v1947 = vpack.c.b16 %v1894, %v1893
    %v1948 = vpack.c.b16 %v1896, %v1895
    %v1949 = vpack.c.b16 %v1898, %v1897
    %v1950 = vpack.c.b16 %v1900, %v1899
    %v1951 = vpack.c.b16 %v1902, %v1901
    %v1952 = vpack.c.b16 %v1904, %v1903
    %v1953 = vpack.c.b16 %v1906, %v1905
    %v1954 = vpack.c.b16 %v1908, %v1907
    %v1955 = vpack.c.b16 %v1910, %v1909
    %v1956 = vpack.c.b16 %v1912, %v1911
    %v1957 = vpack.c.b16 %v1914, %v1913
    %v1958 = vpack.c.b16 %v1916, %v1915
    %v1959 = vpack.c.b16 %v1918, %v1917
    %v1960 = vpack.c.b16 %v1920, %v1919
    %v1961 = vpack.c.b16 %v1922, %v1921
    %v1962 = vpack.c.b16 %v1924, %v1923
    %v1963 = vpack.c.b16 %v1926, %v1925
    %v1964 = vpack.c.b16 %v1928, %v1927
    %v1965 = vpack.c.b16 %v1930, %v1929
    %v1966 = vpack.c.b16 %v1932, %v1931
    %v1967 = vpack.c.b16 %v1934, %v1933
    %v1968 = vpack.c.b16 %v1936, %v1935
    %2001 = vmatprep.subr.bf16.mxu0 0
    %2002 = vmatpush1.bf16.msra.mxu0 %v1944
    %2003 = vmatprep.subr.bf16.mxu0 0
    %2004 = vmatpush1.bf16.msra.mxu0 %v1943
    %2005 = vmatprep.subr.bf16.mxu0 0
    %2006 = vmatpush1.bf16.msra.mxu0 %v1942
    %2007 = vmatprep.subr.bf16.mxu0 0
    %2008 = vmatpush1.bf16.msra.mxu0 %v1941
    %2009 = vmatprep.subr.bf16.mxu0 0
    %2010 = vmatpush1.bf16.msra.mxu0 %v1940
    %2011 = vmatprep.subr.bf16.mxu0 0
    %2012 = vmatpush1.bf16.msra.mxu0 %v1939
    %2013 = vmatprep.subr.bf16.mxu0 0
    %2014 = vmatpush1.bf16.msra.mxu0 %v1938
    %2015 = vmatprep.subr.bf16.mxu0 0
    %2016 = vmatpush1.bf16.msra.mxu0 %v1937
    %2017 = vmatprep.subr.bf16.mxu0 0
    %2018 = vmatpush2.bf16.msra.mxu0 %v1952
    %2019 = vmatprep.subr.bf16.mxu0 0
    %2020 = vmatpush2.bf16.msra.mxu0 %v1951
    %2021 = vmatprep.subr.bf16.mxu0 0
    %2022 = vmatpush2.bf16.msra.mxu0 %v1950
    %2023 = vmatprep.subr.bf16.mxu0 0
    %2024 = vmatpush2.bf16.msra.mxu0 %v1949
    %2025 = vmatprep.subr.bf16.mxu0 0
    %2026 = vmatpush2.bf16.msra.mxu0 %v1948
    %2027 = vmatprep.subr.bf16.mxu0 0
    %2028 = vmatpush2.bf16.msra.mxu0 %v1947
    %2029 = vmatprep.subr.bf16.mxu0 0
    %2030 = vmatpush2.bf16.msra.mxu0 %v1946
    %2031 = vmatprep.subr.bf16.mxu0 0
    %2032 = vmatpush2.bf16.msra.mxu0 %v1945
    %2033 = vmatprep.mubr.bf16.mxu0 %v1732
    %2034 = vmatmul.mubr.bf16.gmra.mxu0 %v1731
    %v2035 = vpop.f32.mrf.mxu0
    %v2036 = vadd.f32 %v1807, %v2035
    %v2037 = vpop.f32.mrf.mxu0
    %v2038 = vpop.f32.mrf.mxu0
    %v2039 = vpop.f32.mrf.mxu0
    %2040 = vdwg.mxu0
    %2041 = vmatprep.subr.bf16.mxu0 0
    %2042 = vmatpush1.bf16.msra.mxu0 %v1960
    %2043 = vmatprep.subr.bf16.mxu0 0
    %2044 = vmatpush1.bf16.msra.mxu0 %v1959
    %2045 = vmatprep.subr.bf16.mxu0 0
    %2046 = vmatpush1.bf16.msra.mxu0 %v1958
    %2047 = vmatprep.subr.bf16.mxu0 0
    %2048 = vmatpush1.bf16.msra.mxu0 %v1957
    %2049 = vmatprep.subr.bf16.mxu0 0
    %2050 = vmatpush1.bf16.msra.mxu0 %v1956
    %2051 = vmatprep.subr.bf16.mxu0 0
    %2052 = vmatpush1.bf16.msra.mxu0 %v1955
    %2053 = vmatprep.subr.bf16.mxu0 0
    %2054 = vmatpush1.bf16.msra.mxu0 %v1954
    %2055 = vmatprep.subr.bf16.mxu0 0
    %2056 = vmatpush1.bf16.msra.mxu0 %v1953
    %2057 = vmatprep.subr.bf16.mxu0 0
    %2058 = vmatpush2.bf16.msra.mxu0 %v1968
    %2059 = vmatprep.subr.bf16.mxu0 0
    %2060 = vmatpush2.bf16.msra.mxu0 %v1967
    %2061 = vmatprep.subr.bf16.mxu0 0
    %2062 = vmatpush2.bf16.msra.mxu0 %v1966
    %2063 = vmatprep.subr.bf16.mxu0 0
    %2064 = vmatpush2.bf16.msra.mxu0 %v1965
    %2065 = vmatprep.subr.bf16.mxu0 0
    %2066 = vmatpush2.bf16.msra.mxu0 %v1964
    %2067 = vmatprep.subr.bf16.mxu0 0
    %2068 = vmatpush2.bf16.msra.mxu0 %v1963
    %2069 = vmatprep.subr.bf16.mxu0 0
    %2070 = vmatpush2.bf16.msra.mxu0 %v1962
    %2071 = vmatprep.subr.bf16.mxu0 0
    %2072 = vmatpush2.bf16.msra.mxu0 %v1961
    %2073 = vmatprep.mubr.bf16.mxu0 %v1734
    %2074 = vmatmul.mubr.bf16.gmra.mxu0 %v1733
    %v2075 = vpop.f32.mrf.mxu0
    %v2076 = vadd.f32 %v2036, %v2075
    %v2077 = vpop.f32.mrf.mxu0
    %v2078 = vpop.f32.mrf.mxu0
    %v2079 = vpop.f32.mrf.mxu0
    %2080 = vdwg.mxu0
    %2081 = vst [vmem:[#allocation14] sm:$0x3] %v2076
    // Predicated region
    $region62: #{tpu_custom_call.1} parent=1 // pred_check
      _
    $region63: #{tpu_custom_call.1} parent=1 // pred_check_branch
      %2083 = sbr.rel (0) target = $region65
    $region64: #{tpu_custom_call.1} parent=1 // pred_region
      %s2085 = ssub.s32 32, 32
      %2086 = vsyncadd [#allocation5], %s2085
      %s2088 = sshll.u32 [#allocation14], 4
      %s2089 = int_to_ptr.vmem [resolvable:$true] %s2088
      %2091 = dma.vmem_to_hbm [thread:$0]  %s2089, 32, %s9, [#allocation5]
    $region65: #{tpu_custom_call.1} parent=1 // pred_fallthru
      _
    // Predicated region
    $region66: #{tpu_custom_call.1} parent=1 // pred_check
      _
    $region67: #{tpu_custom_call.1} parent=1 // pred_check_branch
      %2093 = sbr.rel (0) target = $region69
    $region68: #{tpu_custom_call.1} parent=1 // pred_region
      %2094 = dma.done [#allocation5], 32
    $region69: #{tpu_custom_call.1} parent=1 // pred_fallthru
      _
    %2095 = vsyncpa [#allocation4], 1
    %2096 = vsyncpa [#allocation7], 1
    %2097 = vsyncpa [#allocation10], 1
    %2098 = vsyncpa [#allocation13], 1
    %2099 = vsyncpa [#allocation5], 1

</llo_original>
